<compile_context>
chip_gen: v7x
topology: tpu7x:2x2x1
jax: 0.10.0
libtpu: 0.0.40
codegen_flags: <defaults>
</compile_context>

<pallas_src>
import functools

import jax
import jax.numpy as jnp
from jax import lax
from jax.experimental import pallas as pl
from jax.experimental.pallas import tpu as pltpu

BN_EPS = 1e-5
LANE = 128      # TPU lane width: pad GEMM K and Cout dims to multiples of this.
TS_MAX = 1024   # max spatial rows per tile (multiple of 128 -> lane-dense stores).
TK_MAX = 512    # max contraction rows per tile (bounds VMEM independent of Cin).


def _round_up(x, m):
    return (x + m - 1) // m * m


# ---------------------------------------------------------------------------
# Pass 1: K-tiled bf16 GEMM (f32 accumulate) + per-tile per-channel stats.
# ---------------------------------------------------------------------------
def _gemm_stats_kernel(p_ref, w_ref, y_ref, part_ref, acc_ref):
    """p (TS,TK) bf16, w (TK,Cp) bf16 -> y (TS,Cp) bf16, part (2,Cp) f32."""
    k = pl.program_id(2)

    @pl.when(k == 0)
    def _():
        acc_ref[...] = jnp.zeros_like(acc_ref)

    acc_ref[...] += jnp.dot(p_ref[...], w_ref[...],
                            preferred_element_type=jnp.float32)

    @pl.when(k == pl.num_programs(2) - 1)
    def _():
        y = acc_ref[...]
        y_ref[...] = y.astype(y_ref.dtype)
        # Zero-padded rows / channels are exactly zero (conv bias dropped), so
        # no row mask is needed: they contribute nothing to sum / sumsq.
        s = jnp.sum(y, axis=0, keepdims=True)          # (1, Cp)
        sq = jnp.sum(y * y, axis=0, keepdims=True)     # (1, Cp)
        part_ref[...] = jnp.concatenate([s, sq], axis=0)


# ---------------------------------------------------------------------------
# Pass 2: fused BN affine + transpose -> direct channel-major (NCHW) write.
# ---------------------------------------------------------------------------
def _affine_nchw_kernel(y_ref, scale_ref, shift_ref, o_ref, *, cout):
    """y (TS,Cp) bf16, scale/shift (1,Cp) f32 -> o (Cout,TS) f32."""
    y = y_ref[...].astype(jnp.float32)
    out = y * scale_ref[...] + shift_ref[...]            # (TS, Cp)
    o_ref[...] = out.T[:cout, :].astype(o_ref.dtype)     # (Cout, TS); XLU transpose


def _im2col_bf16(x, kh, kw, stride, padding):
    """x: [N, C, H, W] -> patches [N, OH*OW, C*KH*KW] bf16 (C outer, taps inner)."""
    n, c, h, w = x.shape
    x = x.astype(jnp.bfloat16)   # materialize the im2col expansion once, in bf16
    xp = jnp.pad(x, ((0, 0), (0, 0), (padding, padding), (padding, padding)))
    oh = (h + 2 * padding - kh) // stride + 1
    ow = (w + 2 * padding - kw) // stride + 1
    cols = [xp[:, :, i:i + stride * oh:stride, j:j + stride * ow:stride]
            for i in range(kh) for j in range(kw)]
    patches = jnp.stack(cols, axis=2)                    # [N, C, KH*KW, OH, OW]
    patches = patches.reshape(n, c * kh * kw, oh * ow)   # K ordered (c, kh, kw)
    patches = patches.transpose(0, 2, 1)                 # [N, S, K]
    return patches, oh, ow


@functools.partial(jax.jit, static_argnames=("stride", "padding"))
def conv_bn_forward(x, conv_w, conv_b, bn_gamma, bn_beta, *, stride, padding):
    """x: [N, Cin, H, W] NCHW.  Returns [N, Cout, OH, OW] NCHW (PyTorch parity)."""
    del conv_b  # conv bias cancels exactly under training-mode BatchNorm.

    n = x.shape[0]
    cout, cin, kh, kw = conv_w.shape

    patches, oh, ow = _im2col_bf16(x, kh, kw, stride, padding)   # [N, S, K] bf16
    s_dim = oh * ow
    k_dim = cin * kh * kw
    m_total = n * s_dim

    # Tile sizes / padded dims (all lane-dense).
    ts = min(TS_MAX, _round_up(s_dim, LANE))
    s_pad = _round_up(s_dim, ts)
    grid_s = s_pad // ts
    if k_dim <= TK_MAX:
        tk = _round_up(k_dim, LANE)
        kp = tk
    else:
        tk = TK_MAX
        kp = _round_up(k_dim, tk)
    grid_k = kp // tk
    cp = _round_up(cout, LANE)

    patches_b = jnp.pad(patches, ((0, 0), (0, s_pad - s_dim), (0, kp - k_dim)))
    w_mat = conv_w.reshape(cout, k_dim).T                         # [K, Cout]
    w_mat_b = jnp.pad(w_mat, ((0, kp - k_dim), (0, cp - cout))).astype(jnp.bfloat16)

    # ---- Pass 1: tiled GEMM + batch-stat partials -----------------------------
    vmem1 = (2 * ts * tk * 2      # patches blocks (double-buffered, bf16)
             + 2 * tk * cp * 2    # weight blocks
             + 2 * ts * cp * 2    # y output blocks (bf16)
             + 2 * 2 * cp * 4     # partial blocks
             + ts * cp * 4)       # f32 accumulator scratch
    cost1 = pl.CostEstimate(
        flops=2 * n * s_pad * kp * cp,
        transcendentals=0,
        bytes_accessed=(patches_b.size * 2 + w_mat_b.size * 2
                        + n * s_pad * cp * 2 + n * grid_s * 2 * cp * 4))

    y, partials = pl.pallas_call(
        _gemm_stats_kernel,
        grid=(n, grid_s, grid_k),
        in_specs=[
            pl.BlockSpec((pl.Squeezed(), ts, tk), lambda b, i, k: (b, i, k)),
            pl.BlockSpec((tk, cp), lambda b, i, k: (k, 0)),
        ],
        out_specs=[
            pl.BlockSpec((pl.Squeezed(), ts, cp), lambda b, i, k: (b, i, 0)),
            pl.BlockSpec((pl.Squeezed(), pl.Squeezed(), 2, cp),
                         lambda b, i, k: (b, i, 0, 0)),
        ],
        out_shape=[
            jax.ShapeDtypeStruct((n, s_pad, cp), jnp.bfloat16),
            jax.ShapeDtypeStruct((n, grid_s, 2, cp), jnp.float32),
        ],
        scratch_shapes=[pltpu.VMEM((ts, cp), jnp.float32)],
        compiler_params=pltpu.CompilerParams(
            dimension_semantics=("parallel", "parallel", "arbitrary"),
            vmem_limit_bytes=max(int(1.5 * vmem1) + (4 << 20), 16 << 20)),
        cost_estimate=cost1,
    )(patches_b, w_mat_b)

    # ---- Finalize batch statistics (tiny) and fold BN into scale/shift --------
    total = jnp.sum(partials[:, :, 0, :], axis=(0, 1))        # [Cp]
    total_sq = jnp.sum(partials[:, :, 1, :], axis=(0, 1))     # [Cp]
    mean = total / m_total
    var = jnp.maximum(total_sq / m_total - mean * mean, 0.0)  # biased var (BN training)
    gamma_p = jnp.pad(bn_gamma.astype(jnp.float32), (0, cp - cout))
    beta_p = jnp.pad(bn_beta.astype(jnp.float32), (0, cp - cout))
    scale_v = gamma_p * lax.rsqrt(var + BN_EPS)
    shift_v = beta_p - mean * scale_v
    scale = scale_v.reshape(1, cp)
    shift = shift_v.reshape(1, cp)

    # ---- Pass 2: fused BN affine + direct channel-major (NCHW) write ----------
    vmem2 = (2 * ts * cp * 2 + 4 * cp * 4 + 2 * cout * ts * 4 + ts * cp * 4)
    cost2 = pl.CostEstimate(
        flops=2 * n * s_pad * cp,
        transcendentals=0,
        bytes_accessed=n * s_pad * cp * 2 + 2 * cp * 4 + n * cout * s_pad * 4)

    out_nc = pl.pallas_call(
        functools.partial(_affine_nchw_kernel, cout=cout),
        grid=(n, grid_s),
        in_specs=[
            pl.BlockSpec((pl.Squeezed(), ts, cp), lambda b, i: (b, i, 0)),
            pl.BlockSpec((1, cp), lambda b, i: (0, 0)),
            pl.BlockSpec((1, cp), lambda b, i: (0, 0)),
        ],
        out_specs=pl.BlockSpec((pl.Squeezed(), cout, ts), lambda b, i: (b, 0, i)),
        out_shape=jax.ShapeDtypeStruct((n, cout, s_pad), jnp.float32),
        compiler_params=pltpu.CompilerParams(
            dimension_semantics=("parallel", "parallel"),
            vmem_limit_bytes=max(int(1.5 * vmem2) + (4 << 20), 16 << 20)),
        cost_estimate=cost2,
    )(y, scale, shift)

    if s_pad != s_dim:
        out_nc = out_nc[:, :, :s_dim]
    return out_nc.reshape(n, cout, oh, ow)


def _reference(x, conv_w, conv_b, bn_gamma, bn_beta, *, stride, padding, gemm_dtype):
    y = lax.conv_general_dilated(
        x.astype(gemm_dtype), conv_w.astype(gemm_dtype),
        window_strides=(stride, stride),
        padding=[(padding, padding), (padding, padding)],
        dimension_numbers=("NCHW", "OIHW", "NCHW"),
        preferred_element_type=jnp.float32)
    y = y + conv_b[None, :, None, None]
    mean = jnp.mean(y, axis=(0, 2, 3), keepdims=True)
    var = jnp.mean((y - mean) ** 2, axis=(0, 2, 3), keepdims=True)
    y = (y - mean) / jnp.sqrt(var + BN_EPS)
    return y * bn_gamma[None, :, None, None] + bn_beta[None, :, None, None]


if __name__ == "__main__":
    # Module config: Conv_bn(in_planes=4, planes=8, kernel_size=3, stride=1, padding=1)
    N, CIN, H, W = 2, 4, 16, 16
    COUT, KH, KW = 8, 3, 3
    STRIDE, PADDING = 1, 1

    key = jax.random.PRNGKey(0)
    kx, kw_, kb, kg, kbe = jax.random.split(key, 5)
    x = jax.random.normal(kx, (N, CIN, H, W), dtype=jnp.float32)
    conv_w = jax.random.normal(kw_, (COUT, CIN, KH, KW), dtype=jnp.float32) * 0.1
    conv_b = jax.random.normal(kb, (COUT,), dtype=jnp.float32) * 0.1
    bn_gamma = 1.0 + 0.1 * jax.random.normal(kg, (COUT,), dtype=jnp.float32)
    bn_beta = 0.1 * jax.random.normal(kbe, (COUT,), dtype=jnp.float32)

    out = conv_bn_forward(x, conv_w, conv_b, bn_gamma, bn_beta,
                          stride=STRIDE, padding=PADDING)
    out = jax.block_until_ready(out)
    assert out.shape == (N, COUT, H, W)

    # Check vs a reference that uses the same bf16 matmul operands (f32 accumulate);
    # remaining difference is the bf16 rounding of the intermediate activations.
    ref_bf16 = _reference(x, conv_w, conv_b, bn_gamma, bn_beta,
                          stride=STRIDE, padding=PADDING, gemm_dtype=jnp.bfloat16)
    assert jnp.allclose(out, ref_bf16, atol=2e-2, rtol=2e-2), "mismatch vs bf16-matched reference"

    # Loose sanity check vs the exact f32 reference (bf16 operand + intermediate rounding only).
    ref_f32 = _reference(x, conv_w, conv_b, bn_gamma, bn_beta,
                         stride=STRIDE, padding=PADDING, gemm_dtype=jnp.float32)
    assert jnp.allclose(out, ref_f32, atol=5e-2, rtol=5e-2), "mismatch vs f32 reference"

    print("KERNEL_OK")
</pallas_src>

<mosaic_0001>
module attributes {stable_mosaic.version = 11 : i64} {
  func.func @_gemm_stats_kernel(%arg0: i32, %arg1: i32, %arg2: i32, %arg3: memref<1x256x128xbf16, #tpu.memory_space<vmem>>, %arg4: memref<128x128xbf16, #tpu.memory_space<vmem>>, %arg5: memref<1x256x128xbf16, #tpu.memory_space<vmem>>, %arg6: memref<1x1x2x128xf32, #tpu.memory_space<vmem>>, %arg7: memref<256x128xf32, #tpu.memory_space<vmem>>) attributes {dimension_semantics = [#tpu.dimension_semantics<parallel>, #tpu.dimension_semantics<parallel>, #tpu.dimension_semantics<arbitrary>], iteration_bounds = array<i64: 2, 1, 1>, scalar_prefetch = 0 : i64, scratch_operands = 1 : i64, tpu.core_type = #tpu.core_type<tc>, window_params = [{transform_indices = @transform_0, window_bounds = array<i64: 1, 256, 128>}, {transform_indices = @transform_1, window_bounds = array<i64: 128, 128>}, {transform_indices = @transform_2, window_bounds = array<i64: 1, 256, 128>}, {transform_indices = @transform_3, window_bounds = array<i64: 1, 1, 2, 128>}]} {
    %c0_i32 = arith.constant 0 : i32
    %0 = arith.cmpi eq, %arg2, %c0_i32 : i32
    %1 = arith.extui %0 : i1 to i32
    %c0_i32_0 = arith.constant 0 : i32
    %2 = arith.cmpi ne, %1, %c0_i32_0 : i32
    scf.if %2 {
      %cst_11 = arith.constant 0.000000e+00 : f32
      %13 = vector.broadcast %cst_11 : f32 to vector<256x128xf32>
      %c0_12 = arith.constant 0 : index
      %c0_13 = arith.constant 0 : index
      %14 = vector.load %arg7[%c0_12, %c0_13] : memref<256x128xf32, #tpu.memory_space<vmem>>, vector<256x128xf32>
      tpu.vector_store %arg7[%c0_12, %c0_13], %13 {strides = array<i32>} : memref<256x128xf32, #tpu.memory_space<vmem>>, vector<256x128xf32>,
    } else {
    }
    %c0 = arith.constant 0 : index
    %c0_1 = arith.constant 0 : index
    %3 = vector.load %arg7[%c0, %c0_1] : memref<256x128xf32, #tpu.memory_space<vmem>>, vector<256x128xf32>
    %c0_2 = arith.constant 0 : index
    %c0_3 = arith.constant 0 : index
    %c0_4 = arith.constant 0 : index
    %4 = vector.load %arg3[%c0_2, %c0_3, %c0_4] : memref<1x256x128xbf16, #tpu.memory_space<vmem>>, vector<1x256x128xbf16>
    %5 = vector.shape_cast %4 : vector<1x256x128xbf16> to vector<256x128xbf16>
    %c0_5 = arith.constant 0 : index
    %c0_6 = arith.constant 0 : index
    %6 = vector.load %arg4[%c0_5, %c0_6] : memref<128x128xbf16, #tpu.memory_space<vmem>>, vector<128x128xbf16>
    %cst = arith.constant dense<0.000000e+00> : vector<256x128xf32>
    %7 = tpu.matmul %5, %6, %cst {dimension_numbers = #tpu.dot_dimension_numbers<[1], [0], [0], [1], [0, 0, 1, 1], [], []>} : vector<256x128xbf16>, vector<128x128xbf16>, vector<256x128xf32> -> vector<256x128xf32>
    %8 = arith.addf %3, %7 : vector<256x128xf32>
    %c0_7 = arith.constant 0 : index
    %c0_8 = arith.constant 0 : index
    %9 = vector.load %arg7[%c0_7, %c0_8] : memref<256x128xf32, #tpu.memory_space<vmem>>, vector<256x128xf32>
    tpu.vector_store %arg7[%c0_7, %c0_8], %8 {strides = array<i32>} : memref<256x128xf32, #tpu.memory_space<vmem>>, vector<256x128xf32>,
    %c0_i32_9 = arith.constant 0 : i32
    %10 = arith.cmpi eq, %arg2, %c0_i32_9 : i32
    %11 = arith.extui %10 : i1 to i32
    %c0_i32_10 = arith.constant 0 : i32
    %12 = arith.cmpi ne, %11, %c0_i32_10 : i32
    scf.if %12 {
      %c0_11 = arith.constant 0 : index
      %c0_12 = arith.constant 0 : index
      %13 = vector.load %arg7[%c0_11, %c0_12] : memref<256x128xf32, #tpu.memory_space<vmem>>, vector<256x128xf32>
      %14 = arith.truncf %13 : vector<256x128xf32> to vector<256x128xbf16>
      %c0_13 = arith.constant 0 : index
      %c0_14 = arith.constant 0 : index
      %c0_15 = arith.constant 0 : index
      %15 = vector.load %arg5[%c0_13, %c0_14, %c0_15] : memref<1x256x128xbf16, #tpu.memory_space<vmem>>, vector<1x256x128xbf16>
      %16 = vector.shape_cast %15 : vector<1x256x128xbf16> to vector<256x128xbf16>
      %17 = vector.shape_cast %14 : vector<256x128xbf16> to vector<1x256x128xbf16>
      tpu.vector_store %arg5[%c0_13, %c0_14, %c0_15], %17 {strides = array<i32>} : memref<1x256x128xbf16, #tpu.memory_space<vmem>>, vector<1x256x128xbf16>,
      %cst_16 = arith.constant dense<0.000000e+00> : vector<128xf32>
      %18 = vector.multi_reduction <add>, %13, %cst_16 [0] : vector<256x128xf32> to vector<128xf32>
      %19 = vector.shape_cast %18 : vector<128xf32> to vector<1x128xf32>
      %20 = arith.mulf %13, %13 : vector<256x128xf32>
      %cst_17 = arith.constant dense<0.000000e+00> : vector<128xf32>
      %21 = vector.multi_reduction <add>, %20, %cst_17 [0] : vector<256x128xf32> to vector<128xf32>
      %22 = vector.shape_cast %21 : vector<128xf32> to vector<1x128xf32>
      %23 = tpu.concatenate %19, %22 in 0 : vector<1x128xf32>, vector<1x128xf32> -> vector<2x128xf32>
      %c0_18 = arith.constant 0 : index
      %c0_19 = arith.constant 0 : index
      %c0_20 = arith.constant 0 : index
      %c0_21 = arith.constant 0 : index
      %24 = vector.load %arg6[%c0_18, %c0_19, %c0_20, %c0_21] : memref<1x1x2x128xf32, #tpu.memory_space<vmem>>, vector<1x1x2x128xf32>
      %25 = vector.shape_cast %24 : vector<1x1x2x128xf32> to vector<2x128xf32>
      %26 = vector.shape_cast %23 : vector<2x128xf32> to vector<1x1x2x128xf32>
      tpu.vector_store %arg6[%c0_18, %c0_19, %c0_20, %c0_21], %26 {strides = array<i32>} : memref<1x1x2x128xf32, #tpu.memory_space<vmem>>, vector<1x1x2x128xf32>,
    } else {
    }
    return
  }
  func.func @transform_0(%arg0: i32, %arg1: i32, %arg2: i32) -> (i32, i32, i32) {
    %c0_i32 = arith.constant 0 : i32
    return %arg0, %arg1, %arg2 : i32, i32, i32
  }
  func.func @transform_1(%arg0: i32, %arg1: i32, %arg2: i32) -> (i32, i32) {
    %c0_i32 = arith.constant 0 : i32
    %c0_i32_0 = arith.constant 0 : i32
    return %arg2, %c0_i32 : i32, i32
  }
  func.func @transform_2(%arg0: i32, %arg1: i32, %arg2: i32) -> (i32, i32, i32) {
    %c0_i32 = arith.constant 0 : i32
    %c0_i32_0 = arith.constant 0 : i32
    return %arg0, %arg1, %c0_i32 : i32, i32, i32
  }
  func.func @transform_3(%arg0: i32, %arg1: i32, %arg2: i32) -> (i32, i32, i32, i32) {
    %c0_i32 = arith.constant 0 : i32
    %c0_i32_0 = arith.constant 0 : i32
    %c0_i32_1 = arith.constant 0 : i32
    return %arg0, %arg1, %c0_i32, %c0_i32_0 : i32, i32, i32, i32
  }
}

module attributes {stable_mosaic.version = 11 : i64} {
  func.func @_affine_nchw_kernel(%arg0: i32, %arg1: i32, %arg2: memref<1x256x128xbf16, #tpu.memory_space<vmem>>, %arg3: memref<1x128xf32, #tpu.memory_space<vmem>>, %arg4: memref<1x128xf32, #tpu.memory_space<vmem>>, %arg5: memref<1x8x256xf32, #tpu.memory_space<vmem>>) attributes {dimension_semantics = [#tpu.dimension_semantics<parallel>, #tpu.dimension_semantics<parallel>], iteration_bounds = array<i64: 2, 1>, scalar_prefetch = 0 : i64, scratch_operands = 0 : i64, tpu.core_type = #tpu.core_type<tc>, window_params = [{transform_indices = @transform_0, window_bounds = array<i64: 1, 256, 128>}, {pipeline_mode = #tpu.pipeline_mode<synchronous>, transform_indices = @transform_1, window_bounds = array<i64: 1, 128>}, {pipeline_mode = #tpu.pipeline_mode<synchronous>, transform_indices = @transform_2, window_bounds = array<i64: 1, 128>}, {transform_indices = @transform_3, window_bounds = array<i64: 1, 8, 256>}]} {
    %c0 = arith.constant 0 : index
    %c0_0 = arith.constant 0 : index
    %c0_1 = arith.constant 0 : index
    %0 = vector.load %arg2[%c0, %c0_0, %c0_1] : memref<1x256x128xbf16, #tpu.memory_space<vmem>>, vector<1x256x128xbf16>
    %1 = vector.shape_cast %0 : vector<1x256x128xbf16> to vector<256x128xbf16>
    %2 = arith.extf %1 : vector<256x128xbf16> to vector<256x128xf32>
    %c0_2 = arith.constant 0 : index
    %c0_3 = arith.constant 0 : index
    %3 = vector.load %arg3[%c0_2, %c0_3] : memref<1x128xf32, #tpu.memory_space<vmem>>, vector<1x128xf32>
    %4 = vector.broadcast %3 : vector<1x128xf32> to vector<256x128xf32>
    %5 = arith.mulf %2, %4 : vector<256x128xf32>
    %c0_4 = arith.constant 0 : index
    %c0_5 = arith.constant 0 : index
    %6 = vector.load %arg4[%c0_4, %c0_5] : memref<1x128xf32, #tpu.memory_space<vmem>>, vector<1x128xf32>
    %7 = vector.broadcast %6 : vector<1x128xf32> to vector<256x128xf32>
    %8 = arith.addf %5, %7 : vector<256x128xf32>
    %9 = tpu.transpose %8, [1, 0] : vector<256x128xf32> -> vector<128x256xf32>
    %10 = vector.extract_strided_slice %9 {offsets = [0, 0], sizes = [8, 256], strides = [1, 1]} : vector<128x256xf32> to vector<8x256xf32>
    %c0_6 = arith.constant 0 : index
    %c0_7 = arith.constant 0 : index
    %c0_8 = arith.constant 0 : index
    %11 = vector.load %arg5[%c0_6, %c0_7, %c0_8] : memref<1x8x256xf32, #tpu.memory_space<vmem>>, vector<1x8x256xf32>
    %12 = vector.shape_cast %11 : vector<1x8x256xf32> to vector<8x256xf32>
    %13 = vector.shape_cast %10 : vector<8x256xf32> to vector<1x8x256xf32>
    tpu.vector_store %arg5[%c0_6, %c0_7, %c0_8], %13 {strides = array<i32>} : memref<1x8x256xf32, #tpu.memory_space<vmem>>, vector<1x8x256xf32>,
    return
  }
  func.func @transform_0(%arg0: i32, %arg1: i32) -> (i32, i32, i32) {
    %c0_i32 = arith.constant 0 : i32
    %c0_i32_0 = arith.constant 0 : i32
    return %arg0, %arg1, %c0_i32 : i32, i32, i32
  }
  func.func @transform_1(%arg0: i32, %arg1: i32) -> (i32, i32) {
    %c0_i32 = arith.constant 0 : i32
    %c0_i32_0 = arith.constant 0 : i32
    %c0_i32_1 = arith.constant 0 : i32
    return %c0_i32, %c0_i32_0 : i32, i32
  }
  func.func @transform_2(%arg0: i32, %arg1: i32) -> (i32, i32) {
    %c0_i32 = arith.constant 0 : i32
    %c0_i32_0 = arith.constant 0 : i32
    %c0_i32_1 = arith.constant 0 : i32
    return %c0_i32, %c0_i32_0 : i32, i32
  }
  func.func @transform_3(%arg0: i32, %arg1: i32) -> (i32, i32, i32) {
    %c0_i32 = arith.constant 0 : i32
    %c0_i32_0 = arith.constant 0 : i32
    return %arg0, %c0_i32, %arg1 : i32, i32, i32
  }
}

</mosaic_0001>

<llo_original>
// kernel: conv_bn_forward.3
$region0: #{conv_bn_forward.3}
  #allocation0 [shape = 'u32[]', space=smem, size = 0x4, offset = 0x4, fixed_abs, tag = 'smem constant byte address 0x4 - core index']
  #allocation1 [shape = 'u32[144,128]{1,0:T(1,128)}', space=vmem, size = 0x12000, scoped, tag = 'internal scratch']
  %s0 = inlined_call_operand.vmem [shape: bf16[2,256,128], index: 0, kind: input, shape index: {}]
  %s1 = inlined_call_operand.vmem [shape: f32[1,128], index: 1, kind: input, shape index: {}]
  %s2 = inlined_call_operand.vmem [shape: f32[1,128], index: 2, kind: input, shape index: {}]
  %s3 = inlined_call_operand.vmem [shape: f32[2,8,256], index: 3, kind: output, shape index: {}]
  %s4 = sld [smem:[#allocation0]]
  $region45: #{conv_bn_forward.3} parent=0
    _
  %s6 = ssub.s32 1, %s4
  %s7 = scalar_select 0, %s6, %s4
  loop: start=0, step=1, limit=4
  $region2: #{conv_bn_forward.3} parent=0 // loop_pre_header
    _
  $region3: #{conv_bn_forward.3} parent=0 // loop_header
    %s9 = sphi 0, %s13
    %p10 = scmp.ge.s32.totalorder %s9, 4
    %s16 = sphi 0, %s28
    %s17 = sphi 0, %s24
    %s18 = sphi 0, %s16
    %s19 = sphi 0, %s17
    %s20 = sphi 0, %s18
    %s21 = sphi 0, %s19
    %s33 = sphi 0, %s35
    %s36 = sphi 0, %s33
    %s37 = sphi 0, %s36
    %s53 = sphi 0, %s37
    %s57 = sphi 0, %s57
    %s59 = sphi 0, %s57
    %s60 = sphi 0, %s59
    %s74 = sphi 0, %s60
    %s78 = sphi 0, %s78
    %s80 = sphi 0, %s78
    %s81 = sphi 0, %s80
    %s95 = sphi 0, %s81
    %s103 = sphi 0, %s105
    %s106 = sphi 0, %s103
    %s107 = sphi 0, %s106
    %s123 = sphi 0, %s107
  $region4: #{conv_bn_forward.3} parent=0 // loop_header_branch
    %12 = sbr.rel (%p10) target = $region8
  $region5: #{conv_bn_forward.3} parent=0 // loop_body
    %s14 = ssub.s32 %s9, 1
    %s15 = ssub.s32 %s9, 2
    %s22 = sadd.s32 1, %s17
    %p23 = scmp.ge.s32.totalorder %s22, 1
    %s24 = scalar_select %p23, 0, %s22
    %s25 = sadd.s32 1, %s16
    %s26 = scalar_select %p23, %s25, %s16
    %p27 = scmp.ge.s32.totalorder %s26, 2
    %s28 = scalar_select %p27, 0, %s26
    %s29 = ssub.s32 %s16, %s28
    %s30 = ssub.s32 %s17, %s24
    %s31 = sor.u32 %s29, %s30
    %p32 = scmp.eq.s32.totalorder %s31, 0
    %s34 = sadd.s32 %s33, 1
    %s35 = scalar_select %p32, %s33, %s34
    %p38 = pneg %p32
    %p39 = scmp.eq.s32.totalorder %s9, 1
    %p40 = por %p38, %p39
    %p41 = scmp.ne.s32.totalorder %s33, %s36
    %p42 = scmp.eq.s32.totalorder %s9, 0
    %p43 = por %p41, %p42
    %p44 = scmp.ne.s32.totalorder %s33, %s36
    %p45 = scmp.eq.s32.totalorder %s14, 1
    %p46 = por %p44, %p45
    %p47 = scmp.ne.s32.totalorder %s36, %s37
    %p48 = scmp.eq.s32.totalorder %s14, 0
    %p49 = por %p47, %p48
    %p50 = scmp.ne.s32.totalorder %s36, %s37
    %p51 = scmp.eq.s32.totalorder %s15, 1
    %p52 = por %p50, %p51
    %p54 = scmp.ne.s32.totalorder %s37, %s53
    %p55 = scmp.eq.s32.totalorder %s15, 0
    %p56 = por %p54, %p55
    %s58 = sadd.s32 %s57, 1
    %p61 = scmp.eq.s32.totalorder %s9, 1
    %p62 = scmp.ne.s32.totalorder %s57, %s59
    %p63 = scmp.eq.s32.totalorder %s9, 0
    %p64 = por %p62, %p63
    %p65 = scmp.ne.s32.totalorder %s57, %s59
    %p66 = scmp.eq.s32.totalorder %s14, 1
    %p67 = por %p65, %p66
    %p68 = scmp.ne.s32.totalorder %s59, %s60
    %p69 = scmp.eq.s32.totalorder %s14, 0
    %p70 = por %p68, %p69
    %p71 = scmp.ne.s32.totalorder %s59, %s60
    %p72 = scmp.eq.s32.totalorder %s15, 1
    %p73 = por %p71, %p72
    %p75 = scmp.ne.s32.totalorder %s60, %s74
    %p76 = scmp.eq.s32.totalorder %s15, 0
    %p77 = por %p75, %p76
    %s79 = sadd.s32 %s78, 1
    %p82 = scmp.eq.s32.totalorder %s9, 1
    %p83 = scmp.ne.s32.totalorder %s78, %s80
    %p84 = scmp.eq.s32.totalorder %s9, 0
    %p85 = por %p83, %p84
    %p86 = scmp.ne.s32.totalorder %s78, %s80
    %p87 = scmp.eq.s32.totalorder %s14, 1
    %p88 = por %p86, %p87
    %p89 = scmp.ne.s32.totalorder %s80, %s81
    %p90 = scmp.eq.s32.totalorder %s14, 0
    %p91 = por %p89, %p90
    %p92 = scmp.ne.s32.totalorder %s80, %s81
    %p93 = scmp.eq.s32.totalorder %s15, 1
    %p94 = por %p92, %p93
    %p96 = scmp.ne.s32.totalorder %s81, %s95
    %p97 = scmp.eq.s32.totalorder %s15, 0
    %p98 = por %p96, %p97
    %s99 = ssub.s32 %s16, %s28
    %s100 = ssub.s32 %s17, %s24
    %s101 = sor.u32 %s99, %s100
    %p102 = scmp.eq.s32.totalorder %s101, 0
    %s104 = sadd.s32 %s103, 1
    %s105 = scalar_select %p102, %s103, %s104
    %p108 = pneg %p102
    %p109 = scmp.eq.s32.totalorder %s9, 1
    %p110 = por %p108, %p109
    %p111 = scmp.ne.s32.totalorder %s103, %s106
    %p112 = scmp.eq.s32.totalorder %s9, 0
    %p113 = por %p111, %p112
    %p114 = scmp.ne.s32.totalorder %s103, %s106
    %p115 = scmp.eq.s32.totalorder %s14, 1
    %p116 = por %p114, %p115
    %p117 = scmp.ne.s32.totalorder %s106, %s107
    %p118 = scmp.eq.s32.totalorder %s14, 0
    %p119 = por %p117, %p118
    %p120 = scmp.ne.s32.totalorder %s106, %s107
    %p121 = scmp.eq.s32.totalorder %s15, 1
    %p122 = por %p120, %p121
    %p124 = scmp.ne.s32.totalorder %s107, %s123
    %p125 = scmp.eq.s32.totalorder %s15, 0
    %p126 = por %p124, %p125
    %p127 = scmp.le.s32.totalorder 1, %s9
    %p128 = scmp.lt.s32.totalorder %s9, 3
    %p129 = pnand %p127, %p128
    %p130 = pneg %p129
    // Predicated region
    $region9: #{conv_bn_forward.3} parent=5 // pred_check
      _
    $region10: #{conv_bn_forward.3} parent=5 // pred_check_branch
      %132 = sbr.rel (%p129) target = $region12
    $region11: #{conv_bn_forward.3} parent=5 // pred_region
      %s133 = ssub.s32 %s9, 1
      // Predicated region
      $region13: #{conv_bn_forward.3} parent=11 // pred_check
        %p134 = pneg %p70
      $region14: #{conv_bn_forward.3} parent=11 // pred_check_branch
        %136 = sbr.rel (%p134) target = $region16
      $region15: #{conv_bn_forward.3} parent=11 // pred_region
        _
      $region16: #{conv_bn_forward.3} parent=11 // pred_fallthru
        _
      // Predicated region
      $region17: #{conv_bn_forward.3} parent=11 // pred_check
        %p137 = pneg %p91
      $region18: #{conv_bn_forward.3} parent=11 // pred_check_branch
        %139 = sbr.rel (%p137) target = $region20
      $region19: #{conv_bn_forward.3} parent=11 // pred_region
        _
      $region20: #{conv_bn_forward.3} parent=11 // pred_fallthru
        _
    $region12: #{conv_bn_forward.3} parent=5 // pred_fallthru
      _
    %p140 = scmp.lt.s32.totalorder %s9, 2
    // Predicated region
    $region21: #{conv_bn_forward.3} parent=5 // pred_check
      %p141 = pneg %p140
    $region22: #{conv_bn_forward.3} parent=5 // pred_check_branch
      %143 = sbr.rel (%p141) target = $region24
    $region23: #{conv_bn_forward.3} parent=5 // pred_region
      // Predicated region
      $region25: #{conv_bn_forward.3} parent=23 // pred_check
        %p144 = pneg %p43
      $region26: #{conv_bn_forward.3} parent=23 // pred_check_branch
        %146 = sbr.rel (%p144) target = $region28
      $region27: #{conv_bn_forward.3} parent=23 // pred_region
        %s147 = smul.u32 32, %s17
        %p148 = scmp.lt.s32.totalorder %s16, 1
        %s149 = scalar_select %p148, %s16, 1
        %p150 = scmp.lt.s32.totalorder %s147, 31
        %s151 = scalar_select %p150, %s147, 31
        %s152 = smul.addr %s149, 32
        %s153 = sadd.s32 %s151, %s152
        %s154 = smul.addr %s153, 4
        %s155 = scalar_lea.vmem %s0, %s154
        %s156 = smul.u32 32, %s17
      $region28: #{conv_bn_forward.3} parent=23 // pred_fallthru
        _
    $region24: #{conv_bn_forward.3} parent=5 // pred_fallthru
      _
    %p157 = scmp.le.s32.totalorder 1, %s9
    %p158 = scmp.lt.s32.totalorder %s9, 3
    %p159 = pnand %p157, %p158
    %p160 = pneg %p159
    // Predicated region
    $region29: #{conv_bn_forward.3} parent=5 // pred_check
      _
    $region30: #{conv_bn_forward.3} parent=5 // pred_check_branch
      %162 = sbr.rel (%p159) target = $region32
    $region31: #{conv_bn_forward.3} parent=5 // pred_region
      %s163 = ssub.s32 %s9, 1
      %s164 = smul.u32 32, %s19
      %p165 = scmp.lt.s32.totalorder %s18, 1
      %s166 = scalar_select %p165, %s18, 1
      %p167 = scmp.lt.s32.totalorder %s164, 31
      %s168 = scalar_select %p167, %s164, 31
      %s169 = smul.addr %s166, 32
      %s170 = sadd.s32 %s168, %s169
      %s171 = smul.addr %s170, 4
      %s172 = scalar_lea.vmem %s0, %s171
      %p173 = pneg %p49
      %p174 = pneg %p46
      %p175 = pneg %p70
      %p176 = pneg %p67
      %p177 = pneg %p91
      %p178 = pneg %p88
      %p179 = pneg %p119
      %p180 = pneg %p116
      %s181 = smul.u32 2, %s19
      %p182 = scmp.lt.s32.totalorder %s18, 1
      %s183 = scalar_select %p182, %s18, 1
      %p184 = scmp.lt.s32.totalorder %s181, 1
      %s185 = scalar_select %p184, %s181, 1
      %s186 = smul.addr %s183, 2
      %s187 = sadd.s32 %s185, %s186
      %s188 = smul.addr %s187, 8
      %s189 = scalar_lea.vmem %s3, %s188
      %s190 = smul.u32 32, %s19
      %p191 = scmp.lt.s32.totalorder %s18, 1
      %s192 = scalar_select %p191, %s18, 1
      %p193 = scmp.lt.s32.totalorder %s190, 31
      %s194 = scalar_select %p193, %s190, 31
      %s195 = smul.addr %s192, 32
      %s196 = sadd.s32 %s194, %s195
      %s197 = smul.addr %s196, 4
      %s198 = scalar_lea.vmem %s0, %s197
      %s199 = smul.u32 32, %s19
      %s200 = smul.u32 2, %s19
      %p201 = scmp.lt.s32.totalorder %s18, 1
      %s202 = scalar_select %p201, %s18, 1
      %p203 = scmp.lt.s32.totalorder %s200, 1
      %s204 = scalar_select %p203, %s200, 1
      %s205 = smul.addr %s202, 2
      %s206 = sadd.s32 %s204, %s205
      %s207 = smul.addr %s206, 8
      %s208 = scalar_lea.vmem %s3, %s207
      %s209 = smul.u32 2, %s19
      %v210 = vld [vmem:[%s198] sm:$0xf]
      %v211 = vld [vmem:[%s198 + $0x4] sm:$0xf]
      %v212 = vld [vmem:[%s198 + $0x8] sm:$0xf]
      %v213 = vld [vmem:[%s198 + $0xc] sm:$0xf]
      %v214 = vld [vmem:[%s198 + $0x10] sm:$0xf]
      %v215 = vld [vmem:[%s198 + $0x14] sm:$0xf]
      %v216 = vld [vmem:[%s198 + $0x18] sm:$0xf]
      %v217 = vld [vmem:[%s198 + $0x1c] sm:$0xf]
      %v218 = vld [vmem:[%s198 + $0x20] sm:$0xf]
      %v219 = vld [vmem:[%s198 + $0x24] sm:$0xf]
      %v220 = vld [vmem:[%s198 + $0x28] sm:$0xf]
      %v221 = vld [vmem:[%s198 + $0x2c] sm:$0xf]
      %v222 = vld [vmem:[%s198 + $0x30] sm:$0xf]
      %v223 = vld [vmem:[%s198 + $0x34] sm:$0xf]
      %v224 = vld [vmem:[%s198 + $0x38] sm:$0xf]
      %v225 = vld [vmem:[%s198 + $0x3c] sm:$0xf]
      %v226 = vld [vmem:[%s198 + $0x40] sm:$0xf]
      %v227 = vld [vmem:[%s198 + $0x44] sm:$0xf]
      %v228 = vld [vmem:[%s198 + $0x48] sm:$0xf]
      %v229 = vld [vmem:[%s198 + $0x4c] sm:$0xf]
      %v230 = vld [vmem:[%s198 + $0x50] sm:$0xf]
      %v231 = vld [vmem:[%s198 + $0x54] sm:$0xf]
      %v232 = vld [vmem:[%s198 + $0x58] sm:$0xf]
      %v233 = vld [vmem:[%s198 + $0x5c] sm:$0xf]
      %v234 = vld [vmem:[%s198 + $0x60] sm:$0xf]
      %v235 = vld [vmem:[%s198 + $0x64] sm:$0xf]
      %v236 = vld [vmem:[%s198 + $0x68] sm:$0xf]
      %v237 = vld [vmem:[%s198 + $0x6c] sm:$0xf]
      %v238 = vld [vmem:[%s198 + $0x70] sm:$0xf]
      %v239 = vld [vmem:[%s198 + $0x74] sm:$0xf]
      %v240 = vld [vmem:[%s198 + $0x78] sm:$0xf]
      %v241 = vld [vmem:[%s198 + $0x7c] sm:$0xf]
      %v242 = vunpack.c.l.bf16 %v210
      %v243 = vunpack.c.l.bf16 %v211
      %v244 = vunpack.c.l.bf16 %v212
      %v245 = vunpack.c.l.bf16 %v213
      %v246 = vunpack.c.l.bf16 %v214
      %v247 = vunpack.c.l.bf16 %v215
      %v248 = vunpack.c.l.bf16 %v216
      %v249 = vunpack.c.l.bf16 %v217
      %v250 = vunpack.c.l.bf16 %v218
      %v251 = vunpack.c.l.bf16 %v219
      %v252 = vunpack.c.l.bf16 %v220
      %v253 = vunpack.c.l.bf16 %v221
      %v254 = vunpack.c.l.bf16 %v222
      %v255 = vunpack.c.l.bf16 %v223
      %v256 = vunpack.c.l.bf16 %v224
      %v257 = vunpack.c.l.bf16 %v225
      %v258 = vunpack.c.l.bf16 %v226
      %v259 = vunpack.c.l.bf16 %v227
      %v260 = vunpack.c.l.bf16 %v228
      %v261 = vunpack.c.l.bf16 %v229
      %v262 = vunpack.c.l.bf16 %v230
      %v263 = vunpack.c.l.bf16 %v231
      %v264 = vunpack.c.l.bf16 %v232
      %v265 = vunpack.c.l.bf16 %v233
      %v266 = vunpack.c.l.bf16 %v234
      %v267 = vunpack.c.l.bf16 %v235
      %v268 = vunpack.c.l.bf16 %v236
      %v269 = vunpack.c.l.bf16 %v237
      %v270 = vunpack.c.l.bf16 %v238
      %v271 = vunpack.c.l.bf16 %v239
      %v272 = vunpack.c.l.bf16 %v240
      %v273 = vunpack.c.l.bf16 %v241
      %v274 = vld [vmem:[%s1] sm:$0x1]
      %v276 = vlaneseq
      %v277 = vshrl.u32 %v276, 7
      %v278 = vsub.s32 0, %v277
      %v279 = vrot.slane %v274, %v278
      %v281 = vmul.f32 %v242, %v279
      %v282 = vmul.f32 %v243, %v279
      %v283 = vmul.f32 %v244, %v279
      %v284 = vmul.f32 %v245, %v279
      %v285 = vmul.f32 %v246, %v279
      %v286 = vmul.f32 %v247, %v279
      %v287 = vmul.f32 %v248, %v279
      %v288 = vmul.f32 %v249, %v279
      %v289 = vmul.f32 %v250, %v279
      %v290 = vmul.f32 %v251, %v279
      %v291 = vmul.f32 %v252, %v279
      %v292 = vmul.f32 %v253, %v279
      %v293 = vmul.f32 %v254, %v279
      %v294 = vmul.f32 %v255, %v279
      %v295 = vmul.f32 %v256, %v279
      %v296 = vmul.f32 %v257, %v279
      %v297 = vmul.f32 %v258, %v279
      %v298 = vmul.f32 %v259, %v279
      %v299 = vmul.f32 %v260, %v279
      %v300 = vmul.f32 %v261, %v279
      %v301 = vmul.f32 %v262, %v279
      %v302 = vmul.f32 %v263, %v279
      %v303 = vmul.f32 %v264, %v279
      %v304 = vmul.f32 %v265, %v279
      %v305 = vmul.f32 %v266, %v279
      %v306 = vmul.f32 %v267, %v279
      %v307 = vmul.f32 %v268, %v279
      %v308 = vmul.f32 %v269, %v279
      %v309 = vmul.f32 %v270, %v279
      %v310 = vmul.f32 %v271, %v279
      %v311 = vmul.f32 %v272, %v279
      %v312 = vmul.f32 %v273, %v279
      %v313 = vld [vmem:[%s2] sm:$0x1]
      %v315 = vlaneseq
      %v316 = vshrl.u32 %v315, 7
      %v317 = vsub.s32 0, %v316
      %v318 = vrot.slane %v313, %v317
      %v320 = vadd.f32 %v281, %v318
      %v321 = vadd.f32 %v282, %v318
      %v322 = vadd.f32 %v283, %v318
      %v323 = vadd.f32 %v284, %v318
      %v324 = vadd.f32 %v285, %v318
      %v325 = vadd.f32 %v286, %v318
      %v326 = vadd.f32 %v287, %v318
      %v327 = vadd.f32 %v288, %v318
      %v328 = vadd.f32 %v289, %v318
      %v329 = vadd.f32 %v290, %v318
      %v330 = vadd.f32 %v291, %v318
      %v331 = vadd.f32 %v292, %v318
      %v332 = vadd.f32 %v293, %v318
      %v333 = vadd.f32 %v294, %v318
      %v334 = vadd.f32 %v295, %v318
      %v335 = vadd.f32 %v296, %v318
      %v336 = vadd.f32 %v297, %v318
      %v337 = vadd.f32 %v298, %v318
      %v338 = vadd.f32 %v299, %v318
      %v339 = vadd.f32 %v300, %v318
      %v340 = vadd.f32 %v301, %v318
      %v341 = vadd.f32 %v302, %v318
      %v342 = vadd.f32 %v303, %v318
      %v343 = vadd.f32 %v304, %v318
      %v344 = vadd.f32 %v305, %v318
      %v345 = vadd.f32 %v306, %v318
      %v346 = vadd.f32 %v307, %v318
      %v347 = vadd.f32 %v308, %v318
      %v348 = vadd.f32 %v309, %v318
      %v349 = vadd.f32 %v310, %v318
      %v350 = vadd.f32 %v311, %v318
      %v351 = vadd.f32 %v312, %v318
      %352 = vxpose.xlu0.b32.start [1/16] %v320, 128
      %353 = vxpose.xlu0.b32.cont [2/16] %v321, 128
      %354 = vxpose.xlu0.b32.cont [3/16] %v322, 128
      %355 = vxpose.xlu0.b32.cont [4/16] %v323, 128
      %356 = vxpose.xlu0.b32.cont [5/16] %v324, 128
      %357 = vxpose.xlu0.b32.cont [6/16] %v325, 128
      %358 = vxpose.xlu0.b32.cont [7/16] %v326, 128
      %359 = vxpose.xlu0.b32.cont [8/16] %v327, 128
      %360 = vxpose.xlu0.b32.cont [9/16] %v328, 128
      %361 = vxpose.xlu0.b32.cont [10/16] %v329, 128
      %362 = vxpose.xlu0.b32.cont [11/16] %v330, 128
      %363 = vxpose.xlu0.b32.cont [12/16] %v331, 128
      %364 = vxpose.xlu0.b32.cont [13/16] %v332, 128
      %365 = vxpose.xlu0.b32.cont [14/16] %v333, 128
      %366 = vxpose.xlu0.b32.cont [15/16] %v334, 128
      %367 = vxpose.xlu0.b32.end [16/16] %v335, 128
      %v368 = vpop.trf.xlu0
      %v369 = vpop.trf.xlu0
      %v370 = vpop.trf.xlu0
      %v371 = vpop.trf.xlu0
      %v372 = vpop.trf.xlu0
      %v373 = vpop.trf.xlu0
      %v374 = vpop.trf.xlu0
      %v375 = vpop.trf.xlu0
      %v376 = vpop.trf.xlu0
      %v377 = vpop.trf.xlu0
      %v378 = vpop.trf.xlu0
      %v379 = vpop.trf.xlu0
      %v380 = vpop.trf.xlu0
      %v381 = vpop.trf.xlu0
      %v382 = vpop.trf.xlu0
      %v383 = vpop.trf.xlu0
      %384 = vxpose.xlu0.b32.start [1/16] %v336, 128
      %385 = vxpose.xlu0.b32.cont [2/16] %v337, 128
      %386 = vxpose.xlu0.b32.cont [3/16] %v338, 128
      %387 = vxpose.xlu0.b32.cont [4/16] %v339, 128
      %388 = vxpose.xlu0.b32.cont [5/16] %v340, 128
      %389 = vxpose.xlu0.b32.cont [6/16] %v341, 128
      %390 = vxpose.xlu0.b32.cont [7/16] %v342, 128
      %391 = vxpose.xlu0.b32.cont [8/16] %v343, 128
      %392 = vxpose.xlu0.b32.cont [9/16] %v344, 128
      %393 = vxpose.xlu0.b32.cont [10/16] %v345, 128
      %394 = vxpose.xlu0.b32.cont [11/16] %v346, 128
      %395 = vxpose.xlu0.b32.cont [12/16] %v347, 128
      %396 = vxpose.xlu0.b32.cont [13/16] %v348, 128
      %397 = vxpose.xlu0.b32.cont [14/16] %v349, 128
      %398 = vxpose.xlu0.b32.cont [15/16] %v350, 128
      %399 = vxpose.xlu0.b32.end [16/16] %v351, 128
      %v400 = vpop.trf.xlu0
      %v401 = vpop.trf.xlu0
      %v402 = vpop.trf.xlu0
      %v403 = vpop.trf.xlu0
      %v404 = vpop.trf.xlu0
      %v405 = vpop.trf.xlu0
      %v406 = vpop.trf.xlu0
      %v407 = vpop.trf.xlu0
      %v408 = vpop.trf.xlu0
      %v409 = vpop.trf.xlu0
      %v410 = vpop.trf.xlu0
      %v411 = vpop.trf.xlu0
      %v412 = vpop.trf.xlu0
      %v413 = vpop.trf.xlu0
      %v414 = vpop.trf.xlu0
      %v415 = vpop.trf.xlu0
      %416 = vst [vmem:[%s208] sm:$0xff] %v368
      %417 = vst [vmem:[%s208 + $0x8] sm:$0xff] %v400
      %s418 = smul.u32 2, %s19
      %p419 = scmp.lt.s32.totalorder %s18, 1
      %s420 = scalar_select %p419, %s18, 1
      %p421 = scmp.lt.s32.totalorder %s418, 1
      %s422 = scalar_select %p421, %s418, 1
      %s423 = smul.addr %s420, 2
      %s424 = sadd.s32 %s422, %s423
      %s425 = smul.addr %s424, 8
      %s426 = scalar_lea.vmem %s3, %s425
      // Predicated region
      $region33: #{conv_bn_forward.3} parent=31 // pred_check
        %p427 = pneg %p116
      $region34: #{conv_bn_forward.3} parent=31 // pred_check_branch
        %429 = sbr.rel (%p427) target = $region36
      $region35: #{conv_bn_forward.3} parent=31 // pred_region
        %s430 = smul.u32 2, %s19
      $region36: #{conv_bn_forward.3} parent=31 // pred_fallthru
        _
    $region32: #{conv_bn_forward.3} parent=5 // pred_fallthru
      _
    %p431 = scmp.le.s32.totalorder 2, %s9
    // Predicated region
    $region37: #{conv_bn_forward.3} parent=5 // pred_check
      %p432 = pneg %p431
    $region38: #{conv_bn_forward.3} parent=5 // pred_check_branch
      %434 = sbr.rel (%p432) target = $region40
    $region39: #{conv_bn_forward.3} parent=5 // pred_region
      %s435 = ssub.s32 %s9, 2
      // Predicated region
      $region41: #{conv_bn_forward.3} parent=39 // pred_check
        %p436 = pneg %p122
      $region42: #{conv_bn_forward.3} parent=39 // pred_check_branch
        %438 = sbr.rel (%p436) target = $region44
      $region43: #{conv_bn_forward.3} parent=39 // pred_region
        %s439 = smul.u32 2, %s21
        %p440 = scmp.lt.s32.totalorder %s20, 1
        %s441 = scalar_select %p440, %s20, 1
        %p442 = scmp.lt.s32.totalorder %s439, 1
        %s443 = scalar_select %p442, %s439, 1
        %s444 = smul.addr %s441, 2
        %s445 = sadd.s32 %s443, %s444
        %s446 = smul.addr %s445, 8
        %s447 = scalar_lea.vmem %s3, %s446
      $region44: #{conv_bn_forward.3} parent=39 // pred_fallthru
        _
    $region40: #{conv_bn_forward.3} parent=5 // pred_fallthru
      _
  $region6: #{conv_bn_forward.3} parent=0 // loop_footer
    %s13 = sadd.s32 1, %s9
  $region7: #{conv_bn_forward.3} parent=0 // loop_footer_branch
    %8 = sbr.rel target = $region3
  $region8: #{conv_bn_forward.3} parent=0 // loop_exit
    _

// kernel: conv_bn_forward.2
$region0: #{conv_bn_forward.2}
  #allocation0 [shape = 'u32[]', space=smem, size = 0x4, offset = 0x4, fixed_abs, tag = 'smem constant byte address 0x4 - core index']
  #allocation1 [shape = 'u32[144,128]{1,0:T(1,128)}', space=vmem, size = 0x12000, scoped, tag = 'internal scratch']
  #allocation2 [shape = 'f32[256,128]{1,0:T(8,128)}', space=vmem, size = 0x20000, scoped, tag = 'scratch operand']
  %s0 = inlined_call_operand.vmem [shape: bf16[2,256,128], index: 0, kind: input, shape index: {}]
  %s1 = inlined_call_operand.vmem [shape: bf16[128,128], index: 1, kind: input, shape index: {}]
  %s2 = inlined_call_operand.vmem [shape: bf16[2,256,128], index: 2, kind: output, shape index: {0}]
  %s3 = inlined_call_operand.vmem [shape: f32[2,1,2,128], index: 3, kind: output, shape index: {1}]
  %4 = xla_tuple %s2, %s3
  %s5 = sld [smem:[#allocation0]]
  $region57: #{conv_bn_forward.2} parent=0
    _
  %s7 = ssub.s32 1, %s5
  %s8 = scalar_select 0, %s7, %s5
  loop: start=0, step=1, limit=4
  $region2: #{conv_bn_forward.2} parent=0 // loop_pre_header
    _
  $region3: #{conv_bn_forward.2} parent=0 // loop_header
    %s10 = sphi 0, %s14
    %p11 = scmp.ge.s32.totalorder %s10, 4
    %s17 = sphi 0, %s36
    %s18 = sphi 0, %s32
    %s19 = sphi 0, %s28
    %s20 = sphi 0, %s17
    %s21 = sphi 0, %s18
    %s22 = sphi 0, %s19
    %s23 = sphi 0, %s20
    %s24 = sphi 0, %s21
    %s25 = sphi 0, %s22
    %s43 = sphi 0, %s45
    %s46 = sphi 0, %s43
    %s47 = sphi 0, %s46
    %s63 = sphi 0, %s47
    %s69 = sphi 0, %s71
    %s72 = sphi 0, %s69
    %s73 = sphi 0, %s72
    %s89 = sphi 0, %s73
    %s97 = sphi 0, %s99
    %s100 = sphi 0, %s97
    %s101 = sphi 0, %s100
    %s117 = sphi 0, %s101
    %s125 = sphi 0, %s127
    %s128 = sphi 0, %s125
    %s129 = sphi 0, %s128
    %s145 = sphi 0, %s129
  $region4: #{conv_bn_forward.2} parent=0 // loop_header_branch
    %13 = sbr.rel (%p11) target = $region8
  $region5: #{conv_bn_forward.2} parent=0 // loop_body
    %s15 = ssub.s32 %s10, 1
    %s16 = ssub.s32 %s10, 2
    %s26 = sadd.s32 1, %s19
    %p27 = scmp.ge.s32.totalorder %s26, 1
    %s28 = scalar_select %p27, 0, %s26
    %s29 = sadd.s32 1, %s18
    %s30 = scalar_select %p27, %s29, %s18
    %p31 = scmp.ge.s32.totalorder %s30, 1
    %s32 = scalar_select %p31, 0, %s30
    %s33 = sadd.s32 1, %s17
    %s34 = scalar_select %p31, %s33, %s17
    %p35 = scmp.ge.s32.totalorder %s34, 2
    %s36 = scalar_select %p35, 0, %s34
    %s37 = ssub.s32 %s17, %s36
    %s38 = ssub.s32 %s18, %s32
    %s39 = sor.u32 %s37, %s38
    %s40 = ssub.s32 %s19, %s28
    %s41 = sor.u32 %s39, %s40
    %p42 = scmp.eq.s32.totalorder %s41, 0
    %s44 = sadd.s32 %s43, 1
    %s45 = scalar_select %p42, %s43, %s44
    %p48 = pneg %p42
    %p49 = scmp.eq.s32.totalorder %s10, 1
    %p50 = por %p48, %p49
    %p51 = scmp.ne.s32.totalorder %s43, %s46
    %p52 = scmp.eq.s32.totalorder %s10, 0
    %p53 = por %p51, %p52
    %p54 = scmp.ne.s32.totalorder %s43, %s46
    %p55 = scmp.eq.s32.totalorder %s15, 1
    %p56 = por %p54, %p55
    %p57 = scmp.ne.s32.totalorder %s46, %s47
    %p58 = scmp.eq.s32.totalorder %s15, 0
    %p59 = por %p57, %p58
    %p60 = scmp.ne.s32.totalorder %s46, %s47
    %p61 = scmp.eq.s32.totalorder %s16, 1
    %p62 = por %p60, %p61
    %p64 = scmp.ne.s32.totalorder %s47, %s63
    %p65 = scmp.eq.s32.totalorder %s16, 0
    %p66 = por %p64, %p65
    %s67 = ssub.s32 %s19, %s28
    %p68 = scmp.eq.s32.totalorder %s67, 0
    %s70 = sadd.s32 %s69, 1
    %s71 = scalar_select %p68, %s69, %s70
    %p74 = pneg %p68
    %p75 = scmp.eq.s32.totalorder %s10, 1
    %p76 = por %p74, %p75
    %p77 = scmp.ne.s32.totalorder %s69, %s72
    %p78 = scmp.eq.s32.totalorder %s10, 0
    %p79 = por %p77, %p78
    %p80 = scmp.ne.s32.totalorder %s69, %s72
    %p81 = scmp.eq.s32.totalorder %s15, 1
    %p82 = por %p80, %p81
    %p83 = scmp.ne.s32.totalorder %s72, %s73
    %p84 = scmp.eq.s32.totalorder %s15, 0
    %p85 = por %p83, %p84
    %p86 = scmp.ne.s32.totalorder %s72, %s73
    %p87 = scmp.eq.s32.totalorder %s16, 1
    %p88 = por %p86, %p87
    %p90 = scmp.ne.s32.totalorder %s73, %s89
    %p91 = scmp.eq.s32.totalorder %s16, 0
    %p92 = por %p90, %p91
    %s93 = ssub.s32 %s17, %s36
    %s94 = ssub.s32 %s18, %s32
    %s95 = sor.u32 %s93, %s94
    %p96 = scmp.eq.s32.totalorder %s95, 0
    %s98 = sadd.s32 %s97, 1
    %s99 = scalar_select %p96, %s97, %s98
    %p102 = pneg %p96
    %p103 = scmp.eq.s32.totalorder %s10, 1
    %p104 = por %p102, %p103
    %p105 = scmp.ne.s32.totalorder %s97, %s100
    %p106 = scmp.eq.s32.totalorder %s10, 0
    %p107 = por %p105, %p106
    %p108 = scmp.ne.s32.totalorder %s97, %s100
    %p109 = scmp.eq.s32.totalorder %s15, 1
    %p110 = por %p108, %p109
    %p111 = scmp.ne.s32.totalorder %s100, %s101
    %p112 = scmp.eq.s32.totalorder %s15, 0
    %p113 = por %p111, %p112
    %p114 = scmp.ne.s32.totalorder %s100, %s101
    %p115 = scmp.eq.s32.totalorder %s16, 1
    %p116 = por %p114, %p115
    %p118 = scmp.ne.s32.totalorder %s101, %s117
    %p119 = scmp.eq.s32.totalorder %s16, 0
    %p120 = por %p118, %p119
    %s121 = ssub.s32 %s17, %s36
    %s122 = ssub.s32 %s18, %s32
    %s123 = sor.u32 %s121, %s122
    %p124 = scmp.eq.s32.totalorder %s123, 0
    %s126 = sadd.s32 %s125, 1
    %s127 = scalar_select %p124, %s125, %s126
    %p130 = pneg %p124
    %p131 = scmp.eq.s32.totalorder %s10, 1
    %p132 = por %p130, %p131
    %p133 = scmp.ne.s32.totalorder %s125, %s128
    %p134 = scmp.eq.s32.totalorder %s10, 0
    %p135 = por %p133, %p134
    %p136 = scmp.ne.s32.totalorder %s125, %s128
    %p137 = scmp.eq.s32.totalorder %s15, 1
    %p138 = por %p136, %p137
    %p139 = scmp.ne.s32.totalorder %s128, %s129
    %p140 = scmp.eq.s32.totalorder %s15, 0
    %p141 = por %p139, %p140
    %p142 = scmp.ne.s32.totalorder %s128, %s129
    %p143 = scmp.eq.s32.totalorder %s16, 1
    %p144 = por %p142, %p143
    %p146 = scmp.ne.s32.totalorder %s129, %s145
    %p147 = scmp.eq.s32.totalorder %s16, 0
    %p148 = por %p146, %p147
    %p149 = scmp.le.s32.totalorder 1, %s10
    %p150 = scmp.lt.s32.totalorder %s10, 3
    %p151 = pnand %p149, %p150
    %p152 = pneg %p151
    // Predicated region
    $region9: #{conv_bn_forward.2} parent=5 // pred_check
      _
    $region10: #{conv_bn_forward.2} parent=5 // pred_check_branch
      %154 = sbr.rel (%p151) target = $region12
    $region11: #{conv_bn_forward.2} parent=5 // pred_region
      %s155 = ssub.s32 %s10, 1
      // Predicated region
      $region13: #{conv_bn_forward.2} parent=11 // pred_check
        %p156 = pneg %p85
      $region14: #{conv_bn_forward.2} parent=11 // pred_check_branch
        %158 = sbr.rel (%p156) target = $region16
      $region15: #{conv_bn_forward.2} parent=11 // pred_region
        %s159 = smul.u32 16, %s22
        %p160 = scmp.lt.s32.totalorder %s159, 15
        %s161 = scalar_select %p160, %s159, 15
        %s162 = smul.addr %s161, 4
        %s163 = scalar_lea.vmem %s1, %s162
        %s164 = smul.u32 16, %s22
      $region16: #{conv_bn_forward.2} parent=11 // pred_fallthru
        _
    $region12: #{conv_bn_forward.2} parent=5 // pred_fallthru
      _
    %p165 = scmp.lt.s32.totalorder %s10, 2
    // Predicated region
    $region17: #{conv_bn_forward.2} parent=5 // pred_check
      %p166 = pneg %p165
    $region18: #{conv_bn_forward.2} parent=5 // pred_check_branch
      %168 = sbr.rel (%p166) target = $region20
    $region19: #{conv_bn_forward.2} parent=5 // pred_region
      // Predicated region
      $region21: #{conv_bn_forward.2} parent=19 // pred_check
        %p169 = pneg %p53
      $region22: #{conv_bn_forward.2} parent=19 // pred_check_branch
        %171 = sbr.rel (%p169) target = $region24
      $region23: #{conv_bn_forward.2} parent=19 // pred_region
        %s172 = smul.u32 32, %s18
        %p173 = scmp.lt.s32.totalorder %s17, 1
        %s174 = scalar_select %p173, %s17, 1
        %p175 = scmp.lt.s32.totalorder %s172, 31
        %s176 = scalar_select %p175, %s172, 31
        %p177 = scmp.lt.s32.totalorder %s19, 0
        %s178 = scalar_select %p177, %s19, 0
        %s179 = sadd.s32 %s178, %s176
        %s180 = smul.addr %s174, 32
        %s181 = sadd.s32 %s179, %s180
        %s182 = smul.addr %s181, 4
        %s183 = scalar_lea.vmem %s0, %s182
        %s184 = smul.u32 32, %s18
      $region24: #{conv_bn_forward.2} parent=19 // pred_fallthru
        _
    $region20: #{conv_bn_forward.2} parent=5 // pred_fallthru
      _
    %p185 = scmp.le.s32.totalorder 1, %s10
    %p186 = scmp.lt.s32.totalorder %s10, 3
    %p187 = pnand %p185, %p186
    %p188 = pneg %p187
    // Predicated region
    $region25: #{conv_bn_forward.2} parent=5 // pred_check
      _
    $region26: #{conv_bn_forward.2} parent=5 // pred_check_branch
      %190 = sbr.rel (%p187) target = $region28
    $region27: #{conv_bn_forward.2} parent=5 // pred_region
      %s191 = ssub.s32 %s10, 1
      %s192 = smul.u32 32, %s21
      %p193 = scmp.lt.s32.totalorder %s20, 1
      %s194 = scalar_select %p193, %s20, 1
      %p195 = scmp.lt.s32.totalorder %s192, 31
      %s196 = scalar_select %p195, %s192, 31
      %p197 = scmp.lt.s32.totalorder %s22, 0
      %s198 = scalar_select %p197, %s22, 0
      %s199 = sadd.s32 %s198, %s196
      %s200 = smul.addr %s194, 32
      %s201 = sadd.s32 %s199, %s200
      %s202 = smul.addr %s201, 4
      %s203 = scalar_lea.vmem %s0, %s202
      %p204 = pneg %p59
      %p205 = pneg %p56
      %s206 = smul.u32 16, %s22
      %p207 = scmp.lt.s32.totalorder %s206, 15
      %s208 = scalar_select %p207, %s206, 15
      %s209 = smul.addr %s208, 4
      %s210 = scalar_lea.vmem %s1, %s209
      %p211 = pneg %p85
      %p212 = pneg %p82
      %p213 = pneg %p113
      %p214 = pneg %p110
      %s215 = smul.u32 32, %s21
      %p216 = scmp.lt.s32.totalorder %s20, 1
      %s217 = scalar_select %p216, %s20, 1
      %p218 = scmp.lt.s32.totalorder %s215, 31
      %s219 = scalar_select %p218, %s215, 31
      %s220 = smul.addr %s217, 32
      %s221 = sadd.s32 %s219, %s220
      %s222 = smul.addr %s221, 4
      %s223 = scalar_lea.vmem %s2, %s222
      %p224 = pneg %p141
      %p225 = pneg %p138
      %p226 = scmp.lt.s32.totalorder %s20, 1
      %s227 = scalar_select %p226, %s20, 1
      %p228 = scmp.lt.s32.totalorder %s21, 0
      %s229 = scalar_select %p228, %s21, 0
      %s230 = sadd.s32 %s229, %s227
      %s231 = smul.addr %s230, 2
      %s232 = scalar_lea.vmem %s3, %s231
      %s233 = smul.u32 32, %s21
      %p234 = scmp.lt.s32.totalorder %s20, 1
      %s235 = scalar_select %p234, %s20, 1
      %p236 = scmp.lt.s32.totalorder %s233, 31
      %s237 = scalar_select %p236, %s233, 31
      %p238 = scmp.lt.s32.totalorder %s22, 0
      %s239 = scalar_select %p238, %s22, 0
      %s240 = sadd.s32 %s239, %s237
      %s241 = smul.addr %s235, 32
      %s242 = sadd.s32 %s240, %s241
      %s243 = smul.addr %s242, 4
      %s244 = scalar_lea.vmem %s0, %s243
      %s245 = smul.u32 32, %s21
      %s246 = smul.u32 16, %s22
      %p247 = scmp.lt.s32.totalorder %s246, 15
      %s248 = scalar_select %p247, %s246, 15
      %s249 = smul.addr %s248, 4
      %s250 = scalar_lea.vmem %s1, %s249
      %s251 = smul.u32 16, %s22
      %s252 = smul.u32 32, %s21
      %p253 = scmp.lt.s32.totalorder %s20, 1
      %s254 = scalar_select %p253, %s20, 1
      %p255 = scmp.lt.s32.totalorder %s252, 31
      %s256 = scalar_select %p255, %s252, 31
      %s257 = smul.addr %s254, 32
      %s258 = sadd.s32 %s256, %s257
      %s259 = smul.addr %s258, 4
      %s260 = scalar_lea.vmem %s2, %s259
      %s261 = smul.u32 32, %s21
      %p262 = scmp.lt.s32.totalorder %s20, 1
      %s263 = scalar_select %p262, %s20, 1
      %p264 = scmp.lt.s32.totalorder %s21, 0
      %s265 = scalar_select %p264, %s21, 0
      %s266 = sadd.s32 %s265, %s263
      %s267 = smul.addr %s266, 2
      %s268 = scalar_lea.vmem %s3, %s267
      %p270 = scmp.eq.s32.totalorder %s22, 0
      // Predicated region
      $region29: #{conv_bn_forward.2} parent=27 // pred_check
        %p271 = pneg %p270
      $region30: #{conv_bn_forward.2} parent=27 // pred_check_branch
        %273 = sbr.rel (%p271) target = $region32
      $region31: #{conv_bn_forward.2} parent=27 // pred_region
        %274 = vst [vmem:[#allocation2] sm:$0xff] 0.0
        %275 = vst [vmem:[#allocation2 + $0x8] sm:$0xff] 0.0
        %276 = vst [vmem:[#allocation2 + $0x10] sm:$0xff] 0.0
        %277 = vst [vmem:[#allocation2 + $0x18] sm:$0xff] 0.0
        %278 = vst [vmem:[#allocation2 + $0x20] sm:$0xff] 0.0
        %279 = vst [vmem:[#allocation2 + $0x28] sm:$0xff] 0.0
        %280 = vst [vmem:[#allocation2 + $0x30] sm:$0xff] 0.0
        %281 = vst [vmem:[#allocation2 + $0x38] sm:$0xff] 0.0
        %282 = vst [vmem:[#allocation2 + $0x40] sm:$0xff] 0.0
        %283 = vst [vmem:[#allocation2 + $0x48] sm:$0xff] 0.0
        %284 = vst [vmem:[#allocation2 + $0x50] sm:$0xff] 0.0
        %285 = vst [vmem:[#allocation2 + $0x58] sm:$0xff] 0.0
        %286 = vst [vmem:[#allocation2 + $0x60] sm:$0xff] 0.0
        %287 = vst [vmem:[#allocation2 + $0x68] sm:$0xff] 0.0
        %288 = vst [vmem:[#allocation2 + $0x70] sm:$0xff] 0.0
        %289 = vst [vmem:[#allocation2 + $0x78] sm:$0xff] 0.0
        %290 = vst [vmem:[#allocation2 + $0x80] sm:$0xff] 0.0
        %291 = vst [vmem:[#allocation2 + $0x88] sm:$0xff] 0.0
        %292 = vst [vmem:[#allocation2 + $0x90] sm:$0xff] 0.0
        %293 = vst [vmem:[#allocation2 + $0x98] sm:$0xff] 0.0
        %294 = vst [vmem:[#allocation2 + $0xa0] sm:$0xff] 0.0
        %295 = vst [vmem:[#allocation2 + $0xa8] sm:$0xff] 0.0
        %296 = vst [vmem:[#allocation2 + $0xb0] sm:$0xff] 0.0
        %297 = vst [vmem:[#allocation2 + $0xb8] sm:$0xff] 0.0
        %298 = vst [vmem:[#allocation2 + $0xc0] sm:$0xff] 0.0
        %299 = vst [vmem:[#allocation2 + $0xc8] sm:$0xff] 0.0
        %300 = vst [vmem:[#allocation2 + $0xd0] sm:$0xff] 0.0
        %301 = vst [vmem:[#allocation2 + $0xd8] sm:$0xff] 0.0
        %302 = vst [vmem:[#allocation2 + $0xe0] sm:$0xff] 0.0
        %303 = vst [vmem:[#allocation2 + $0xe8] sm:$0xff] 0.0
        %304 = vst [vmem:[#allocation2 + $0xf0] sm:$0xff] 0.0
        %305 = vst [vmem:[#allocation2 + $0xf8] sm:$0xff] 0.0
      $region32: #{conv_bn_forward.2} parent=27 // pred_fallthru
        _
      %v306 = vld [vmem:[#allocation2] sm:$0xff]
      %v307 = vld [vmem:[#allocation2 + $0x8] sm:$0xff]
      %v308 = vld [vmem:[#allocation2 + $0x10] sm:$0xff]
      %v309 = vld [vmem:[#allocation2 + $0x18] sm:$0xff]
      %v310 = vld [vmem:[#allocation2 + $0x20] sm:$0xff]
      %v311 = vld [vmem:[#allocation2 + $0x28] sm:$0xff]
      %v312 = vld [vmem:[#allocation2 + $0x30] sm:$0xff]
      %v313 = vld [vmem:[#allocation2 + $0x38] sm:$0xff]
      %v314 = vld [vmem:[#allocation2 + $0x40] sm:$0xff]
      %v315 = vld [vmem:[#allocation2 + $0x48] sm:$0xff]
      %v316 = vld [vmem:[#allocation2 + $0x50] sm:$0xff]
      %v317 = vld [vmem:[#allocation2 + $0x58] sm:$0xff]
      %v318 = vld [vmem:[#allocation2 + $0x60] sm:$0xff]
      %v319 = vld [vmem:[#allocation2 + $0x68] sm:$0xff]
      %v320 = vld [vmem:[#allocation2 + $0x70] sm:$0xff]
      %v321 = vld [vmem:[#allocation2 + $0x78] sm:$0xff]
      %v322 = vld [vmem:[#allocation2 + $0x80] sm:$0xff]
      %v323 = vld [vmem:[#allocation2 + $0x88] sm:$0xff]
      %v324 = vld [vmem:[#allocation2 + $0x90] sm:$0xff]
      %v325 = vld [vmem:[#allocation2 + $0x98] sm:$0xff]
      %v326 = vld [vmem:[#allocation2 + $0xa0] sm:$0xff]
      %v327 = vld [vmem:[#allocation2 + $0xa8] sm:$0xff]
      %v328 = vld [vmem:[#allocation2 + $0xb0] sm:$0xff]
      %v329 = vld [vmem:[#allocation2 + $0xb8] sm:$0xff]
      %v330 = vld [vmem:[#allocation2 + $0xc0] sm:$0xff]
      %v331 = vld [vmem:[#allocation2 + $0xc8] sm:$0xff]
      %v332 = vld [vmem:[#allocation2 + $0xd0] sm:$0xff]
      %v333 = vld [vmem:[#allocation2 + $0xd8] sm:$0xff]
      %v334 = vld [vmem:[#allocation2 + $0xe0] sm:$0xff]
      %v335 = vld [vmem:[#allocation2 + $0xe8] sm:$0xff]
      %v336 = vld [vmem:[#allocation2 + $0xf0] sm:$0xff]
      %v337 = vld [vmem:[#allocation2 + $0xf8] sm:$0xff]
      %v338 = vld [vmem:[%s244] sm:$0xf]
      %v339 = vld [vmem:[%s244 + $0x4] sm:$0xf]
      %v340 = vld [vmem:[%s244 + $0x8] sm:$0xf]
      %v341 = vld [vmem:[%s244 + $0xc] sm:$0xf]
      %v342 = vld [vmem:[%s244 + $0x10] sm:$0xf]
      %v343 = vld [vmem:[%s244 + $0x14] sm:$0xf]
      %v344 = vld [vmem:[%s244 + $0x18] sm:$0xf]
      %v345 = vld [vmem:[%s244 + $0x1c] sm:$0xf]
      %v346 = vld [vmem:[%s244 + $0x20] sm:$0xf]
      %v347 = vld [vmem:[%s244 + $0x24] sm:$0xf]
      %v348 = vld [vmem:[%s244 + $0x28] sm:$0xf]
      %v349 = vld [vmem:[%s244 + $0x2c] sm:$0xf]
      %v350 = vld [vmem:[%s244 + $0x30] sm:$0xf]
      %v351 = vld [vmem:[%s244 + $0x34] sm:$0xf]
      %v352 = vld [vmem:[%s244 + $0x38] sm:$0xf]
      %v353 = vld [vmem:[%s244 + $0x3c] sm:$0xf]
      %v354 = vld [vmem:[%s244 + $0x40] sm:$0xf]
      %v355 = vld [vmem:[%s244 + $0x44] sm:$0xf]
      %v356 = vld [vmem:[%s244 + $0x48] sm:$0xf]
      %v357 = vld [vmem:[%s244 + $0x4c] sm:$0xf]
      %v358 = vld [vmem:[%s244 + $0x50] sm:$0xf]
      %v359 = vld [vmem:[%s244 + $0x54] sm:$0xf]
      %v360 = vld [vmem:[%s244 + $0x58] sm:$0xf]
      %v361 = vld [vmem:[%s244 + $0x5c] sm:$0xf]
      %v362 = vld [vmem:[%s244 + $0x60] sm:$0xf]
      %v363 = vld [vmem:[%s244 + $0x64] sm:$0xf]
      %v364 = vld [vmem:[%s244 + $0x68] sm:$0xf]
      %v365 = vld [vmem:[%s244 + $0x6c] sm:$0xf]
      %v366 = vld [vmem:[%s244 + $0x70] sm:$0xf]
      %v367 = vld [vmem:[%s244 + $0x74] sm:$0xf]
      %v368 = vld [vmem:[%s244 + $0x78] sm:$0xf]
      %v369 = vld [vmem:[%s244 + $0x7c] sm:$0xf]
      %v370 = vld [vmem:[%s250] sm:$0xf]
      %v371 = vld [vmem:[%s250 + $0x4] sm:$0xf]
      %v372 = vld [vmem:[%s250 + $0x8] sm:$0xf]
      %v373 = vld [vmem:[%s250 + $0xc] sm:$0xf]
      %v374 = vld [vmem:[%s250 + $0x10] sm:$0xf]
      %v375 = vld [vmem:[%s250 + $0x14] sm:$0xf]
      %v376 = vld [vmem:[%s250 + $0x18] sm:$0xf]
      %v377 = vld [vmem:[%s250 + $0x1c] sm:$0xf]
      %v378 = vld [vmem:[%s250 + $0x20] sm:$0xf]
      %v379 = vld [vmem:[%s250 + $0x24] sm:$0xf]
      %v380 = vld [vmem:[%s250 + $0x28] sm:$0xf]
      %v381 = vld [vmem:[%s250 + $0x2c] sm:$0xf]
      %v382 = vld [vmem:[%s250 + $0x30] sm:$0xf]
      %v383 = vld [vmem:[%s250 + $0x34] sm:$0xf]
      %v384 = vld [vmem:[%s250 + $0x38] sm:$0xf]
      %v385 = vld [vmem:[%s250 + $0x3c] sm:$0xf]
      %v418 = vunpack.c.l.b16 %v338
      %v419 = vunpack.c.l.b16 %v339
      %v420 = vunpack.c.l.b16 %v340
      %v421 = vunpack.c.l.b16 %v341
      %v422 = vunpack.c.l.b16 %v342
      %v423 = vunpack.c.l.b16 %v343
      %v424 = vunpack.c.l.b16 %v344
      %v425 = vunpack.c.l.b16 %v345
      %v426 = vunpack.c.l.b16 %v346
      %v427 = vunpack.c.l.b16 %v347
      %v428 = vunpack.c.l.b16 %v348
      %v429 = vunpack.c.l.b16 %v349
      %v430 = vunpack.c.l.b16 %v350
      %v431 = vunpack.c.l.b16 %v351
      %v432 = vunpack.c.l.b16 %v352
      %v433 = vunpack.c.l.b16 %v353
      %v434 = vunpack.c.l.b16 %v354
      %v435 = vunpack.c.l.b16 %v355
      %v436 = vunpack.c.l.b16 %v356
      %v437 = vunpack.c.l.b16 %v357
      %v438 = vunpack.c.l.b16 %v358
      %v439 = vunpack.c.l.b16 %v359
      %v440 = vunpack.c.l.b16 %v360
      %v441 = vunpack.c.l.b16 %v361
      %v442 = vunpack.c.l.b16 %v362
      %v443 = vunpack.c.l.b16 %v363
      %v444 = vunpack.c.l.b16 %v364
      %v445 = vunpack.c.l.b16 %v365
      %v446 = vunpack.c.l.b16 %v366
      %v447 = vunpack.c.l.b16 %v367
      %v448 = vunpack.c.l.b16 %v368
      %v449 = vunpack.c.l.b16 %v369
      %v450 = vpack.c.b16 %v419, %v418
      %v451 = vpack.c.b16 %v421, %v420
      %v452 = vpack.c.b16 %v423, %v422
      %v453 = vpack.c.b16 %v425, %v424
      %v454 = vpack.c.b16 %v427, %v426
      %v455 = vpack.c.b16 %v429, %v428
      %v456 = vpack.c.b16 %v431, %v430
      %v457 = vpack.c.b16 %v433, %v432
      %v458 = vpack.c.b16 %v435, %v434
      %v459 = vpack.c.b16 %v437, %v436
      %v460 = vpack.c.b16 %v439, %v438
      %v461 = vpack.c.b16 %v441, %v440
      %v462 = vpack.c.b16 %v443, %v442
      %v463 = vpack.c.b16 %v445, %v444
      %v464 = vpack.c.b16 %v447, %v446
      %v465 = vpack.c.b16 %v449, %v448
      %v498 = vunpack.c.l.b16 %v370
      %v499 = vunpack.c.l.b16 %v371
      %v500 = vunpack.c.l.b16 %v372
      %v501 = vunpack.c.l.b16 %v373
      %v502 = vunpack.c.l.b16 %v374
      %v503 = vunpack.c.l.b16 %v375
      %v504 = vunpack.c.l.b16 %v376
      %v505 = vunpack.c.l.b16 %v377
      %v506 = vunpack.c.l.b16 %v378
      %v507 = vunpack.c.l.b16 %v379
      %v508 = vunpack.c.l.b16 %v380
      %v509 = vunpack.c.l.b16 %v381
      %v510 = vunpack.c.l.b16 %v382
      %v511 = vunpack.c.l.b16 %v383
      %v512 = vunpack.c.l.b16 %v384
      %v513 = vunpack.c.l.b16 %v385
      %v514 = vpack.c.b16 %v499, %v498
      %v515 = vpack.c.b16 %v501, %v500
      %v516 = vpack.c.b16 %v503, %v502
      %v517 = vpack.c.b16 %v505, %v504
      %v518 = vpack.c.b16 %v507, %v506
      %v519 = vpack.c.b16 %v509, %v508
      %v520 = vpack.c.b16 %v511, %v510
      %v521 = vpack.c.b16 %v513, %v512
      %530 = vmatprep.subr.bf16.mxu0 0
      %531 = vmatpush1.bf16.msra.mxu0 %v514
      %532 = vmatprep.subr.bf16.mxu0 0
      %533 = vmatpush1.bf16.msra.mxu0 %v515
      %534 = vmatprep.subr.bf16.mxu0 0
      %535 = vmatpush1.bf16.msra.mxu0 %v516
      %536 = vmatprep.subr.bf16.mxu0 0
      %537 = vmatpush1.bf16.msra.mxu0 %v517
      %538 = vmatprep.subr.bf16.mxu0 0
      %539 = vmatpush1.bf16.msra.mxu0 %v518
      %540 = vmatprep.subr.bf16.mxu0 0
      %541 = vmatpush1.bf16.msra.mxu0 %v519
      %542 = vmatprep.subr.bf16.mxu0 0
      %543 = vmatpush1.bf16.msra.mxu0 %v520
      %544 = vmatprep.subr.bf16.mxu0 0
      %545 = vmatpush1.bf16.msra.mxu0 %v521
      %546 = vmatprep.subr.bf16.mxu0 0
      %547 = vmatpush1.bf16.msra.mxu0 0
      %548 = vmatprep.subr.bf16.mxu0 0
      %549 = vmatpush1.bf16.msra.mxu0 0
      %550 = vmatprep.subr.bf16.mxu0 0
      %551 = vmatpush1.bf16.msra.mxu0 0
      %552 = vmatprep.subr.bf16.mxu0 0
      %553 = vmatpush1.bf16.msra.mxu0 0
      %554 = vmatprep.subr.bf16.mxu0 0
      %555 = vmatpush1.bf16.msra.mxu0 0
      %556 = vmatprep.subr.bf16.mxu0 0
      %557 = vmatpush1.bf16.msra.mxu0 0
      %558 = vmatprep.subr.bf16.mxu0 0
      %559 = vmatpush1.bf16.msra.mxu0 0
      %560 = vmatprep.subr.bf16.mxu0 0
      %561 = vmatpush1.bf16.msra.mxu0 0
      %562 = vmatprep.mubr.bf16.mxu0 0
      %563 = vmatmul.mubr.bf16.gmra.mrb[0].mxu0 %v450
      %v564 = vpop.f32.mrb[0].mxu0
      %v565 = vadd.f32 0.0, %v564
      %v566 = vpop.f32.mrb[0].mxu0
      %v567 = vpop.f32.mrb[0].mxu0
      %v568 = vadd.f32 0.0, %v567
      %v569 = vpop.f32.mrb[0].mxu0
      %570 = vmatprep.mubr.bf16.mxu0 0
      %571 = vmatmul.mubr.bf16.gmra.mrb[0].mxu0 %v451
      %v572 = vpop.f32.mrb[0].mxu0
      %v573 = vadd.f32 0.0, %v572
      %v574 = vpop.f32.mrb[0].mxu0
      %v575 = vpop.f32.mrb[0].mxu0
      %v576 = vadd.f32 0.0, %v575
      %v577 = vpop.f32.mrb[0].mxu0
      %578 = vmatprep.mubr.bf16.mxu0 0
      %579 = vmatmul.mubr.bf16.gmra.mrb[0].mxu0 %v452
      %v580 = vpop.f32.mrb[0].mxu0
      %v581 = vadd.f32 0.0, %v580
      %v582 = vpop.f32.mrb[0].mxu0
      %v583 = vpop.f32.mrb[0].mxu0
      %v584 = vadd.f32 0.0, %v583
      %v585 = vpop.f32.mrb[0].mxu0
      %586 = vmatprep.mubr.bf16.mxu0 0
      %587 = vmatmul.mubr.bf16.gmra.mrb[0].mxu0 %v453
      %v588 = vpop.f32.mrb[0].mxu0
      %v589 = vadd.f32 0.0, %v588
      %v590 = vpop.f32.mrb[0].mxu0
      %v591 = vpop.f32.mrb[0].mxu0
      %v592 = vadd.f32 0.0, %v591
      %v593 = vpop.f32.mrb[0].mxu0
      %594 = vmatprep.mubr.bf16.mxu0 0
      %595 = vmatmul.mubr.bf16.gmra.mrb[0].mxu0 %v454
      %v596 = vpop.f32.mrb[0].mxu0
      %v597 = vadd.f32 0.0, %v596
      %v598 = vpop.f32.mrb[0].mxu0
      %v599 = vpop.f32.mrb[0].mxu0
      %v600 = vadd.f32 0.0, %v599
      %v601 = vpop.f32.mrb[0].mxu0
      %602 = vmatprep.mubr.bf16.mxu0 0
      %603 = vmatmul.mubr.bf16.gmra.mrb[0].mxu0 %v455
      %v604 = vpop.f32.mrb[0].mxu0
      %v605 = vadd.f32 0.0, %v604
      %v606 = vpop.f32.mrb[0].mxu0
      %v607 = vpop.f32.mrb[0].mxu0
      %v608 = vadd.f32 0.0, %v607
      %v609 = vpop.f32.mrb[0].mxu0
      %610 = vmatprep.mubr.bf16.mxu0 0
      %611 = vmatmul.mubr.bf16.gmra.mrb[0].mxu0 %v456
      %v612 = vpop.f32.mrb[0].mxu0
      %v613 = vadd.f32 0.0, %v612
      %v614 = vpop.f32.mrb[0].mxu0
      %v615 = vpop.f32.mrb[0].mxu0
      %v616 = vadd.f32 0.0, %v615
      %v617 = vpop.f32.mrb[0].mxu0
      %618 = vmatprep.mubr.bf16.mxu0 0
      %619 = vmatmul.mubr.bf16.gmra.mrb[0].mxu0 %v457
      %v620 = vpop.f32.mrb[0].mxu0
      %v621 = vadd.f32 0.0, %v620
      %v622 = vpop.f32.mrb[0].mxu0
      %v623 = vpop.f32.mrb[0].mxu0
      %v624 = vadd.f32 0.0, %v623
      %v625 = vpop.f32.mrb[0].mxu0
      %626 = vmatprep.mubr.bf16.mxu0 0
      %627 = vmatmul.mubr.bf16.gmra.mrb[0].mxu0 %v458
      %v628 = vpop.f32.mrb[0].mxu0
      %v629 = vadd.f32 0.0, %v628
      %v630 = vpop.f32.mrb[0].mxu0
      %v631 = vpop.f32.mrb[0].mxu0
      %v632 = vadd.f32 0.0, %v631
      %v633 = vpop.f32.mrb[0].mxu0
      %634 = vmatprep.mubr.bf16.mxu0 0
      %635 = vmatmul.mubr.bf16.gmra.mrb[0].mxu0 %v459
      %v636 = vpop.f32.mrb[0].mxu0
      %v637 = vadd.f32 0.0, %v636
      %v638 = vpop.f32.mrb[0].mxu0
      %v639 = vpop.f32.mrb[0].mxu0
      %v640 = vadd.f32 0.0, %v639
      %v641 = vpop.f32.mrb[0].mxu0
      %642 = vmatprep.mubr.bf16.mxu0 0
      %643 = vmatmul.mubr.bf16.gmra.mrb[0].mxu0 %v460
      %v644 = vpop.f32.mrb[0].mxu0
      %v645 = vadd.f32 0.0, %v644
      %v646 = vpop.f32.mrb[0].mxu0
      %v647 = vpop.f32.mrb[0].mxu0
      %v648 = vadd.f32 0.0, %v647
      %v649 = vpop.f32.mrb[0].mxu0
      %650 = vmatprep.mubr.bf16.mxu0 0
      %651 = vmatmul.mubr.bf16.gmra.mrb[0].mxu0 %v461
      %v652 = vpop.f32.mrb[0].mxu0
      %v653 = vadd.f32 0.0, %v652
      %v654 = vpop.f32.mrb[0].mxu0
      %v655 = vpop.f32.mrb[0].mxu0
      %v656 = vadd.f32 0.0, %v655
      %v657 = vpop.f32.mrb[0].mxu0
      %658 = vmatprep.mubr.bf16.mxu0 0
      %659 = vmatmul.mubr.bf16.gmra.mrb[0].mxu0 %v462
      %v660 = vpop.f32.mrb[0].mxu0
      %v661 = vadd.f32 0.0, %v660
      %v662 = vpop.f32.mrb[0].mxu0
      %v663 = vpop.f32.mrb[0].mxu0
      %v664 = vadd.f32 0.0, %v663
      %v665 = vpop.f32.mrb[0].mxu0
      %666 = vmatprep.mubr.bf16.mxu0 0
      %667 = vmatmul.mubr.bf16.gmra.mrb[0].mxu0 %v463
      %v668 = vpop.f32.mrb[0].mxu0
      %v669 = vadd.f32 0.0, %v668
      %v670 = vpop.f32.mrb[0].mxu0
      %v671 = vpop.f32.mrb[0].mxu0
      %v672 = vadd.f32 0.0, %v671
      %v673 = vpop.f32.mrb[0].mxu0
      %674 = vmatprep.mubr.bf16.mxu0 0
      %675 = vmatmul.mubr.bf16.gmra.mrb[0].mxu0 %v464
      %v676 = vpop.f32.mrb[0].mxu0
      %v677 = vadd.f32 0.0, %v676
      %v678 = vpop.f32.mrb[0].mxu0
      %v679 = vpop.f32.mrb[0].mxu0
      %v680 = vadd.f32 0.0, %v679
      %v681 = vpop.f32.mrb[0].mxu0
      %682 = vmatprep.mubr.bf16.mxu0 0
      %683 = vmatmul.mubr.bf16.gmra.mrb[0].mxu0 %v465
      %v684 = vpop.f32.mrb[0].mxu0
      %v685 = vadd.f32 0.0, %v684
      %v686 = vpop.f32.mrb[0].mxu0
      %v687 = vpop.f32.mrb[0].mxu0
      %v688 = vadd.f32 0.0, %v687
      %v689 = vpop.f32.mrb[0].mxu0
      %690 = vdwg.mxu0
      %v691 = vadd.f32 %v306, %v565
      %v692 = vadd.f32 %v307, %v568
      %v693 = vadd.f32 %v308, %v573
      %v694 = vadd.f32 %v309, %v576
      %v695 = vadd.f32 %v310, %v581
      %v696 = vadd.f32 %v311, %v584
      %v697 = vadd.f32 %v312, %v589
      %v698 = vadd.f32 %v313, %v592
      %v699 = vadd.f32 %v314, %v597
      %v700 = vadd.f32 %v315, %v600
      %v701 = vadd.f32 %v316, %v605
      %v702 = vadd.f32 %v317, %v608
      %v703 = vadd.f32 %v318, %v613
      %v704 = vadd.f32 %v319, %v616
      %v705 = vadd.f32 %v320, %v621
      %v706 = vadd.f32 %v321, %v624
      %v707 = vadd.f32 %v322, %v629
      %v708 = vadd.f32 %v323, %v632
      %v709 = vadd.f32 %v324, %v637
      %v710 = vadd.f32 %v325, %v640
      %v711 = vadd.f32 %v326, %v645
      %v712 = vadd.f32 %v327, %v648
      %v713 = vadd.f32 %v328, %v653
      %v714 = vadd.f32 %v329, %v656
      %v715 = vadd.f32 %v330, %v661
      %v716 = vadd.f32 %v331, %v664
      %v717 = vadd.f32 %v332, %v669
      %v718 = vadd.f32 %v333, %v672
      %v719 = vadd.f32 %v334, %v677
      %v720 = vadd.f32 %v335, %v680
      %v721 = vadd.f32 %v336, %v685
      %v722 = vadd.f32 %v337, %v688
      %723 = vst [vmem:[#allocation2] sm:$0xff] %v691
      %724 = vst [vmem:[#allocation2 + $0x8] sm:$0xff] %v692
      %725 = vst [vmem:[#allocation2 + $0x10] sm:$0xff] %v693
      %726 = vst [vmem:[#allocation2 + $0x18] sm:$0xff] %v694
      %727 = vst [vmem:[#allocation2 + $0x20] sm:$0xff] %v695
      %728 = vst [vmem:[#allocation2 + $0x28] sm:$0xff] %v696
      %729 = vst [vmem:[#allocation2 + $0x30] sm:$0xff] %v697
      %730 = vst [vmem:[#allocation2 + $0x38] sm:$0xff] %v698
      %731 = vst [vmem:[#allocation2 + $0x40] sm:$0xff] %v699
      %732 = vst [vmem:[#allocation2 + $0x48] sm:$0xff] %v700
      %733 = vst [vmem:[#allocation2 + $0x50] sm:$0xff] %v701
      %734 = vst [vmem:[#allocation2 + $0x58] sm:$0xff] %v702
      %735 = vst [vmem:[#allocation2 + $0x60] sm:$0xff] %v703
      %736 = vst [vmem:[#allocation2 + $0x68] sm:$0xff] %v704
      %737 = vst [vmem:[#allocation2 + $0x70] sm:$0xff] %v705
      %738 = vst [vmem:[#allocation2 + $0x78] sm:$0xff] %v706
      %739 = vst [vmem:[#allocation2 + $0x80] sm:$0xff] %v707
      %740 = vst [vmem:[#allocation2 + $0x88] sm:$0xff] %v708
      %741 = vst [vmem:[#allocation2 + $0x90] sm:$0xff] %v709
      %742 = vst [vmem:[#allocation2 + $0x98] sm:$0xff] %v710
      %743 = vst [vmem:[#allocation2 + $0xa0] sm:$0xff] %v711
      %744 = vst [vmem:[#allocation2 + $0xa8] sm:$0xff] %v712
      %745 = vst [vmem:[#allocation2 + $0xb0] sm:$0xff] %v713
      %746 = vst [vmem:[#allocation2 + $0xb8] sm:$0xff] %v714
      %747 = vst [vmem:[#allocation2 + $0xc0] sm:$0xff] %v715
      %748 = vst [vmem:[#allocation2 + $0xc8] sm:$0xff] %v716
      %749 = vst [vmem:[#allocation2 + $0xd0] sm:$0xff] %v717
      %750 = vst [vmem:[#allocation2 + $0xd8] sm:$0xff] %v718
      %751 = vst [vmem:[#allocation2 + $0xe0] sm:$0xff] %v719
      %752 = vst [vmem:[#allocation2 + $0xe8] sm:$0xff] %v720
      %753 = vst [vmem:[#allocation2 + $0xf0] sm:$0xff] %v721
      %754 = vst [vmem:[#allocation2 + $0xf8] sm:$0xff] %v722
      // Predicated region
      $region33: #{conv_bn_forward.2} parent=27 // pred_check
        %p755 = pneg %p270
      $region34: #{conv_bn_forward.2} parent=27 // pred_check_branch
        %757 = sbr.rel (%p755) target = $region36
      $region35: #{conv_bn_forward.2} parent=27 // pred_region
        %v758 = vld [vmem:[#allocation2] sm:$0xff]
        %v759 = vld [vmem:[#allocation2 + $0x8] sm:$0xff]
        %v760 = vld [vmem:[#allocation2 + $0x10] sm:$0xff]
        %v761 = vld [vmem:[#allocation2 + $0x18] sm:$0xff]
        %v762 = vld [vmem:[#allocation2 + $0x20] sm:$0xff]
        %v763 = vld [vmem:[#allocation2 + $0x28] sm:$0xff]
        %v764 = vld [vmem:[#allocation2 + $0x30] sm:$0xff]
        %v765 = vld [vmem:[#allocation2 + $0x38] sm:$0xff]
        %v766 = vld [vmem:[#allocation2 + $0x40] sm:$0xff]
        %v767 = vld [vmem:[#allocation2 + $0x48] sm:$0xff]
        %v768 = vld [vmem:[#allocation2 + $0x50] sm:$0xff]
        %v769 = vld [vmem:[#allocation2 + $0x58] sm:$0xff]
        %v770 = vld [vmem:[#allocation2 + $0x60] sm:$0xff]
        %v771 = vld [vmem:[#allocation2 + $0x68] sm:$0xff]
        %v772 = vld [vmem:[#allocation2 + $0x70] sm:$0xff]
        %v773 = vld [vmem:[#allocation2 + $0x78] sm:$0xff]
        %v774 = vld [vmem:[#allocation2 + $0x80] sm:$0xff]
        %v775 = vld [vmem:[#allocation2 + $0x88] sm:$0xff]
        %v776 = vld [vmem:[#allocation2 + $0x90] sm:$0xff]
        %v777 = vld [vmem:[#allocation2 + $0x98] sm:$0xff]
        %v778 = vld [vmem:[#allocation2 + $0xa0] sm:$0xff]
        %v779 = vld [vmem:[#allocation2 + $0xa8] sm:$0xff]
        %v780 = vld [vmem:[#allocation2 + $0xb0] sm:$0xff]
        %v781 = vld [vmem:[#allocation2 + $0xb8] sm:$0xff]
        %v782 = vld [vmem:[#allocation2 + $0xc0] sm:$0xff]
        %v783 = vld [vmem:[#allocation2 + $0xc8] sm:$0xff]
        %v784 = vld [vmem:[#allocation2 + $0xd0] sm:$0xff]
        %v785 = vld [vmem:[#allocation2 + $0xd8] sm:$0xff]
        %v786 = vld [vmem:[#allocation2 + $0xe0] sm:$0xff]
        %v787 = vld [vmem:[#allocation2 + $0xe8] sm:$0xff]
        %v788 = vld [vmem:[#allocation2 + $0xf0] sm:$0xff]
        %v789 = vld [vmem:[#allocation2 + $0xf8] sm:$0xff]
        %v790 = vpack.c.bf16 %v759, %v758
        %v791 = vpack.c.bf16 %v761, %v760
        %v792 = vpack.c.bf16 %v763, %v762
        %v793 = vpack.c.bf16 %v765, %v764
        %v794 = vpack.c.bf16 %v767, %v766
        %v795 = vpack.c.bf16 %v769, %v768
        %v796 = vpack.c.bf16 %v771, %v770
        %v797 = vpack.c.bf16 %v773, %v772
        %v798 = vpack.c.bf16 %v775, %v774
        %v799 = vpack.c.bf16 %v777, %v776
        %v800 = vpack.c.bf16 %v779, %v778
        %v801 = vpack.c.bf16 %v781, %v780
        %v802 = vpack.c.bf16 %v783, %v782
        %v803 = vpack.c.bf16 %v785, %v784
        %v804 = vpack.c.bf16 %v787, %v786
        %v805 = vpack.c.bf16 %v789, %v788
        %v822 = vunpack.c.l.b16 %v790
        %v823 = vunpack.c.h.b16 %v790
        %v824 = vunpack.c.l.b16 %v791
        %v825 = vunpack.c.h.b16 %v791
        %v826 = vunpack.c.l.b16 %v792
        %v827 = vunpack.c.h.b16 %v792
        %v828 = vunpack.c.l.b16 %v793
        %v829 = vunpack.c.h.b16 %v793
        %v830 = vunpack.c.l.b16 %v794
        %v831 = vunpack.c.h.b16 %v794
        %v832 = vunpack.c.l.b16 %v795
        %v833 = vunpack.c.h.b16 %v795
        %v834 = vunpack.c.l.b16 %v796
        %v835 = vunpack.c.h.b16 %v796
        %v836 = vunpack.c.l.b16 %v797
        %v837 = vunpack.c.h.b16 %v797
        %v838 = vunpack.c.l.b16 %v798
        %v839 = vunpack.c.h.b16 %v798
        %v840 = vunpack.c.l.b16 %v799
        %v841 = vunpack.c.h.b16 %v799
        %v842 = vunpack.c.l.b16 %v800
        %v843 = vunpack.c.h.b16 %v800
        %v844 = vunpack.c.l.b16 %v801
        %v845 = vunpack.c.h.b16 %v801
        %v846 = vunpack.c.l.b16 %v802
        %v847 = vunpack.c.h.b16 %v802
        %v848 = vunpack.c.l.b16 %v803
        %v849 = vunpack.c.h.b16 %v803
        %v850 = vunpack.c.l.b16 %v804
        %v851 = vunpack.c.h.b16 %v804
        %v852 = vunpack.c.l.b16 %v805
        %v853 = vunpack.c.h.b16 %v805
        %v854 = vpack.c.b16 %v822, %v822
        %v855 = vpack.c.b16 %v823, %v823
        %v856 = vpack.c.b16 %v824, %v824
        %v857 = vpack.c.b16 %v825, %v825
        %v858 = vpack.c.b16 %v826, %v826
        %v859 = vpack.c.b16 %v827, %v827
        %v860 = vpack.c.b16 %v828, %v828
        %v861 = vpack.c.b16 %v829, %v829
        %v862 = vpack.c.b16 %v830, %v830
        %v863 = vpack.c.b16 %v831, %v831
        %v864 = vpack.c.b16 %v832, %v832
        %v865 = vpack.c.b16 %v833, %v833
        %v866 = vpack.c.b16 %v834, %v834
        %v867 = vpack.c.b16 %v835, %v835
        %v868 = vpack.c.b16 %v836, %v836
        %v869 = vpack.c.b16 %v837, %v837
        %v870 = vpack.c.b16 %v838, %v838
        %v871 = vpack.c.b16 %v839, %v839
        %v872 = vpack.c.b16 %v840, %v840
        %v873 = vpack.c.b16 %v841, %v841
        %v874 = vpack.c.b16 %v842, %v842
        %v875 = vpack.c.b16 %v843, %v843
        %v876 = vpack.c.b16 %v844, %v844
        %v877 = vpack.c.b16 %v845, %v845
        %v878 = vpack.c.b16 %v846, %v846
        %v879 = vpack.c.b16 %v847, %v847
        %v880 = vpack.c.b16 %v848, %v848
        %v881 = vpack.c.b16 %v849, %v849
        %v882 = vpack.c.b16 %v850, %v850
        %v883 = vpack.c.b16 %v851, %v851
        %v884 = vpack.c.b16 %v852, %v852
        %v885 = vpack.c.b16 %v853, %v853
        %918 = vst [vmem:[%s260] sm:$0xf] %v854
        %919 = vst [vmem:[%s260 + $0x4] sm:$0xf] %v855
        %920 = vst [vmem:[%s260 + $0x8] sm:$0xf] %v856
        %921 = vst [vmem:[%s260 + $0xc] sm:$0xf] %v857
        %922 = vst [vmem:[%s260 + $0x10] sm:$0xf] %v858
        %923 = vst [vmem:[%s260 + $0x14] sm:$0xf] %v859
        %924 = vst [vmem:[%s260 + $0x18] sm:$0xf] %v860
        %925 = vst [vmem:[%s260 + $0x1c] sm:$0xf] %v861
        %926 = vst [vmem:[%s260 + $0x20] sm:$0xf] %v862
        %927 = vst [vmem:[%s260 + $0x24] sm:$0xf] %v863
        %928 = vst [vmem:[%s260 + $0x28] sm:$0xf] %v864
        %929 = vst [vmem:[%s260 + $0x2c] sm:$0xf] %v865
        %930 = vst [vmem:[%s260 + $0x30] sm:$0xf] %v866
        %931 = vst [vmem:[%s260 + $0x34] sm:$0xf] %v867
        %932 = vst [vmem:[%s260 + $0x38] sm:$0xf] %v868
        %933 = vst [vmem:[%s260 + $0x3c] sm:$0xf] %v869
        %934 = vst [vmem:[%s260 + $0x40] sm:$0xf] %v870
        %935 = vst [vmem:[%s260 + $0x44] sm:$0xf] %v871
        %936 = vst [vmem:[%s260 + $0x48] sm:$0xf] %v872
        %937 = vst [vmem:[%s260 + $0x4c] sm:$0xf] %v873
        %938 = vst [vmem:[%s260 + $0x50] sm:$0xf] %v874
        %939 = vst [vmem:[%s260 + $0x54] sm:$0xf] %v875
        %940 = vst [vmem:[%s260 + $0x58] sm:$0xf] %v876
        %941 = vst [vmem:[%s260 + $0x5c] sm:$0xf] %v877
        %942 = vst [vmem:[%s260 + $0x60] sm:$0xf] %v878
        %943 = vst [vmem:[%s260 + $0x64] sm:$0xf] %v879
        %944 = vst [vmem:[%s260 + $0x68] sm:$0xf] %v880
        %945 = vst [vmem:[%s260 + $0x6c] sm:$0xf] %v881
        %946 = vst [vmem:[%s260 + $0x70] sm:$0xf] %v882
        %947 = vst [vmem:[%s260 + $0x74] sm:$0xf] %v883
        %948 = vst [vmem:[%s260 + $0x78] sm:$0xf] %v884
        %949 = vst [vmem:[%s260 + $0x7c] sm:$0xf] %v885
        %v950 = vadd.f32 %v758, %v759
        %v951 = vadd.f32 %v950, %v760
        %v952 = vadd.f32 %v951, %v761
        %v953 = vadd.f32 %v952, %v762
        %v954 = vadd.f32 %v953, %v763
        %v955 = vadd.f32 %v954, %v764
        %v956 = vadd.f32 %v955, %v765
        %v957 = vadd.f32 %v956, %v766
        %v958 = vadd.f32 %v957, %v767
        %v959 = vadd.f32 %v958, %v768
        %v960 = vadd.f32 %v959, %v769
        %v961 = vadd.f32 %v960, %v770
        %v962 = vadd.f32 %v961, %v771
        %v963 = vadd.f32 %v962, %v772
        %v964 = vadd.f32 %v963, %v773
        %v965 = vadd.f32 %v964, %v774
        %v966 = vadd.f32 %v965, %v775
        %v967 = vadd.f32 %v966, %v776
        %v968 = vadd.f32 %v967, %v777
        %v969 = vadd.f32 %v968, %v778
        %v970 = vadd.f32 %v969, %v779
        %v971 = vadd.f32 %v970, %v780
        %v972 = vadd.f32 %v971, %v781
        %v973 = vadd.f32 %v972, %v782
        %v974 = vadd.f32 %v973, %v783
        %v975 = vadd.f32 %v974, %v784
        %v976 = vadd.f32 %v975, %v785
        %v977 = vadd.f32 %v976, %v786
        %v978 = vadd.f32 %v977, %v787
        %v979 = vadd.f32 %v978, %v788
        %v980 = vadd.f32 %v979, %v789
        %v981 = vrot.slane %v980, 4
        %v982 = vadd.f32 %v980, %v981
        %v983 = vrot.slane %v982, 2
        %v984 = vadd.f32 %v982, %v983
        %v985 = vrot.slane %v984, 1
        %v986 = vadd.f32 %v984, %v985
        %v987 = vmul.f32 %v758, %v758
        %v988 = vmul.f32 %v759, %v759
        %v989 = vmul.f32 %v760, %v760
        %v990 = vmul.f32 %v761, %v761
        %v991 = vmul.f32 %v762, %v762
        %v992 = vmul.f32 %v763, %v763
        %v993 = vmul.f32 %v764, %v764
        %v994 = vmul.f32 %v765, %v765
        %v995 = vmul.f32 %v766, %v766
        %v996 = vmul.f32 %v767, %v767
        %v997 = vmul.f32 %v768, %v768
        %v998 = vmul.f32 %v769, %v769
        %v999 = vmul.f32 %v770, %v770
        %v1000 = vmul.f32 %v771, %v771
        %v1001 = vmul.f32 %v772, %v772
        %v1002 = vmul.f32 %v773, %v773
        %v1003 = vmul.f32 %v774, %v774
        %v1004 = vmul.f32 %v775, %v775
        %v1005 = vmul.f32 %v776, %v776
        %v1006 = vmul.f32 %v777, %v777
        %v1007 = vmul.f32 %v778, %v778
        %v1008 = vmul.f32 %v779, %v779
        %v1009 = vmul.f32 %v780, %v780
        %v1010 = vmul.f32 %v781, %v781
        %v1011 = vmul.f32 %v782, %v782
        %v1012 = vmul.f32 %v783, %v783
        %v1013 = vmul.f32 %v784, %v784
        %v1014 = vmul.f32 %v785, %v785
        %v1015 = vmul.f32 %v786, %v786
        %v1016 = vmul.f32 %v787, %v787
        %v1017 = vmul.f32 %v788, %v788
        %v1018 = vmul.f32 %v789, %v789
        %v1019 = vadd.f32 %v987, %v988
        %v1020 = vadd.f32 %v1019, %v989
        %v1021 = vadd.f32 %v1020, %v990
        %v1022 = vadd.f32 %v1021, %v991
        %v1023 = vadd.f32 %v1022, %v992
        %v1024 = vadd.f32 %v1023, %v993
        %v1025 = vadd.f32 %v1024, %v994
        %v1026 = vadd.f32 %v1025, %v995
        %v1027 = vadd.f32 %v1026, %v996
        %v1028 = vadd.f32 %v1027, %v997
        %v1029 = vadd.f32 %v1028, %v998
        %v1030 = vadd.f32 %v1029, %v999
        %v1031 = vadd.f32 %v1030, %v1000
        %v1032 = vadd.f32 %v1031, %v1001
        %v1033 = vadd.f32 %v1032, %v1002
        %v1034 = vadd.f32 %v1033, %v1003
        %v1035 = vadd.f32 %v1034, %v1004
        %v1036 = vadd.f32 %v1035, %v1005
        %v1037 = vadd.f32 %v1036, %v1006
        %v1038 = vadd.f32 %v1037, %v1007
        %v1039 = vadd.f32 %v1038, %v1008
        %v1040 = vadd.f32 %v1039, %v1009
        %v1041 = vadd.f32 %v1040, %v1010
        %v1042 = vadd.f32 %v1041, %v1011
        %v1043 = vadd.f32 %v1042, %v1012
        %v1044 = vadd.f32 %v1043, %v1013
        %v1045 = vadd.f32 %v1044, %v1014
        %v1046 = vadd.f32 %v1045, %v1015
        %v1047 = vadd.f32 %v1046, %v1016
        %v1048 = vadd.f32 %v1047, %v1017
        %v1049 = vadd.f32 %v1048, %v1018
        %v1050 = vrot.slane %v1049, 4
        %v1051 = vadd.f32 %v1049, %v1050
        %v1052 = vrot.slane %v1051, 2
        %v1053 = vadd.f32 %v1051, %v1052
        %v1054 = vrot.slane %v1053, 1
        %v1055 = vadd.f32 %v1053, %v1054
        %vm1056 = vcmask 1040384
        %v1057 = vsel %vm1056, %v986, %v1055
        %1058 = vst [vmem:[%s268] sm:$0x3] %v1057
      $region36: #{conv_bn_forward.2} parent=27 // pred_fallthru
        _
      %s1059 = smul.u32 32, %s21
      %p1060 = scmp.lt.s32.totalorder %s20, 1
      %s1061 = scalar_select %p1060, %s20, 1
      %p1062 = scmp.lt.s32.totalorder %s1059, 31
      %s1063 = scalar_select %p1062, %s1059, 31
      %s1064 = smul.addr %s1061, 32
      %s1065 = sadd.s32 %s1063, %s1064
      %s1066 = smul.addr %s1065, 4
      %s1067 = scalar_lea.vmem %s2, %s1066
      %p1068 = scmp.lt.s32.totalorder %s20, 1
      %s1069 = scalar_select %p1068, %s20, 1
      %p1070 = scmp.lt.s32.totalorder %s21, 0
      %s1071 = scalar_select %p1070, %s21, 0
      %s1072 = sadd.s32 %s1071, %s1069
      %s1073 = smul.addr %s1072, 2
      %s1074 = scalar_lea.vmem %s3, %s1073
      // Predicated region
      $region37: #{conv_bn_forward.2} parent=27 // pred_check
        %p1075 = pneg %p110
      $region38: #{conv_bn_forward.2} parent=27 // pred_check_branch
        %1077 = sbr.rel (%p1075) target = $region40
      $region39: #{conv_bn_forward.2} parent=27 // pred_region
        %s1078 = smul.u32 32, %s21
      $region40: #{conv_bn_forward.2} parent=27 // pred_fallthru
        _
      // Predicated region
      $region41: #{conv_bn_forward.2} parent=27 // pred_check
        %p1079 = pneg %p138
      $region42: #{conv_bn_forward.2} parent=27 // pred_check_branch
        %1081 = sbr.rel (%p1079) target = $region44
      $region43: #{conv_bn_forward.2} parent=27 // pred_region
        _
      $region44: #{conv_bn_forward.2} parent=27 // pred_fallthru
        _
    $region28: #{conv_bn_forward.2} parent=5 // pred_fallthru
      _
    %p1082 = scmp.le.s32.totalorder 2, %s10
    // Predicated region
    $region45: #{conv_bn_forward.2} parent=5 // pred_check
      %p1083 = pneg %p1082
    $region46: #{conv_bn_forward.2} parent=5 // pred_check_branch
      %1085 = sbr.rel (%p1083) target = $region48
    $region47: #{conv_bn_forward.2} parent=5 // pred_region
      %s1086 = ssub.s32 %s10, 2
      // Predicated region
      $region49: #{conv_bn_forward.2} parent=47 // pred_check
        %p1087 = pneg %p116
      $region50: #{conv_bn_forward.2} parent=47 // pred_check_branch
        %1089 = sbr.rel (%p1087) target = $region52
      $region51: #{conv_bn_forward.2} parent=47 // pred_region
        %s1090 = smul.u32 32, %s24
        %p1091 = scmp.lt.s32.totalorder %s23, 1
        %s1092 = scalar_select %p1091, %s23, 1
        %p1093 = scmp.lt.s32.totalorder %s1090, 31
        %s1094 = scalar_select %p1093, %s1090, 31
        %s1095 = smul.addr %s1092, 32
        %s1096 = sadd.s32 %s1094, %s1095
        %s1097 = smul.addr %s1096, 4
        %s1098 = scalar_lea.vmem %s2, %s1097
      $region52: #{conv_bn_forward.2} parent=47 // pred_fallthru
        _
      // Predicated region
      $region53: #{conv_bn_forward.2} parent=47 // pred_check
        %p1099 = pneg %p144
      $region54: #{conv_bn_forward.2} parent=47 // pred_check_branch
        %1101 = sbr.rel (%p1099) target = $region56
      $region55: #{conv_bn_forward.2} parent=47 // pred_region
        %p1102 = scmp.lt.s32.totalorder %s23, 1
        %s1103 = scalar_select %p1102, %s23, 1
        %p1104 = scmp.lt.s32.totalorder %s24, 0
        %s1105 = scalar_select %p1104, %s24, 0
        %s1106 = sadd.s32 %s1105, %s1103
        %s1107 = smul.addr %s1106, 2
        %s1108 = scalar_lea.vmem %s3, %s1107
      $region56: #{conv_bn_forward.2} parent=47 // pred_fallthru
        _
    $region48: #{conv_bn_forward.2} parent=5 // pred_fallthru
      _
  $region6: #{conv_bn_forward.2} parent=0 // loop_footer
    %s14 = sadd.s32 1, %s10
  $region7: #{conv_bn_forward.2} parent=0 // loop_footer_branch
    %9 = sbr.rel target = $region3
  $region8: #{conv_bn_forward.2} parent=0 // loop_exit
    _

</llo_original>
